<compile_context>
chip_gen: v7x
topology: tpu7x:2x2x1
jax: 0.10.0
libtpu: 0.0.40
codegen_flags: <defaults>
</compile_context>

<pallas_src>
import jax
import jax.numpy as jnp
from jax import lax
from jax.experimental import pallas as pl
from jax.experimental.pallas import tpu as pltpu

EPS = 1e-5


def _make_kernel(H):
    """BottleBlock body; H (image height) is needed for the 3x3 boundary masks."""
    f32, bf16 = jnp.float32, jnp.bfloat16

    def kernel(x_ref, w1_ref, band_ref, w3_ref,
               rmid_ref, bmid_ref, rout_ref, bout_ref,
               bnmid_ref, bnout_ref, o_ref):
        x = x_ref[...]                                          # (M, W*Cin) f32

        def bn(y, g, be, r_ref, b_ref, relu):
            # Training-mode BN.  Rows are reduced first (cheap cross-sublane sum),
            # then a thin (W*C, C) matmul (1/NHW folded into r_ref) gives the
            # per-channel mean / E[y^2].  Affine is folded into y*scale + shift.
            # Note: var = E[y^2] - E[y]^2 is one-pass; fine here (roughly
            # zero-mean conv outputs, f32 accumulation).
            stats = jnp.concatenate(
                [jnp.sum(y, axis=0, keepdims=True),
                 jnp.sum(y * y, axis=0, keepdims=True)], axis=0)           # (2, W*C)
            stats_c = jnp.dot(stats, r_ref[...], preferred_element_type=f32)  # (2, C)
            mean_c = stats_c[0:1, :]
            var_c = stats_c[1:2, :] - mean_c * mean_c
            scale_c = lax.rsqrt(var_c + EPS) * g                # (1, C)
            shift_c = be - mean_c * scale_c                     # (1, C)
            ss = jnp.dot(jnp.concatenate([scale_c, shift_c], axis=0),
                         b_ref[...], preferred_element_type=f32)           # (2, W*C)
            out = y * ss[0:1, :] + ss[1:2, :]
            return jnp.maximum(out, 0.0) if relu else out

        # ---- conv1 (1x1) as block-diagonal lane-dense matmul + BN1 + ReLU -----
        y1 = jnp.dot(x.astype(bf16), w1_ref[...], preferred_element_type=f32)
        y1 = bn(y1, bnmid_ref[0:1, :], bnmid_ref[1:2, :], rmid_ref, bmid_ref, True)

        # ---- conv2 (3x3, stride 1, pad 1) --------------------------------------
        # Vertical taps: XLU sublane roll + VPU boundary mask (no MXU data moves,
        # no extra bf16 round-trips).  Zero padding falls out of the mask.
        M = y1.shape[0]
        h_idx = lax.broadcasted_iota(jnp.int32, y1.shape, 0) % H
        t_up = jnp.where(h_idx != 0, pltpu.roll(y1, shift=1, axis=0), 0.0)
        t_dn = jnp.where(h_idx != H - 1, pltpu.roll(y1, shift=M - 1, axis=0), 0.0)
        # All three kh bands fused into a single K = 3*W*Cmid MXU push.
        y2 = jnp.dot(jnp.concatenate([t_up, y1, t_dn], axis=1).astype(bf16),
                     band_ref[...], preferred_element_type=f32)
        y2 = bn(y2, bnmid_ref[2:3, :], bnmid_ref[3:4, :], rmid_ref, bmid_ref, True)

        # ---- conv3 (1x1) block-diagonal matmul + BN3 ---------------------------
        y3 = jnp.dot(y2.astype(bf16), w3_ref[...], preferred_element_type=f32)
        y3 = bn(y3, bnout_ref[0:1, :], bnout_ref[1:2, :], rout_ref, bout_ref, False)

        # ---- residual add + final ReLU; o_ref aliases x_ref's HBM buffer -------
        o_ref[...] = jnp.maximum(y3 + x, 0.0).astype(o_ref.dtype)

    return kernel


def make_bottle_block(params, N, H, W):
    """Precompute all constant operands ONCE; return a jitted callable x -> out."""
    (w1, _b1, g1, be1, w2, _b2, g2, be2, w3, _b3, g3, be3) = params
    Cmid, Cin = int(w1.shape[0]), int(w1.shape[1])      # torch weight [Cmid, Cin, 1, 1]
    Cout = int(w3.shape[0])
    assert Cout == Cin, "downsample=None requires input_channel == 4*output_channel"
    f32, bf16 = jnp.float32, jnp.bfloat16
    nhw = float(N * H * W)
    M = N * H
    eyeW = jnp.eye(W, dtype=f32)

    # 1x1 convs as block-diagonal lane-dense matmuls (biases dropped — cancelled
    # by the training-mode BN mean subtraction).
    w1_bd = jnp.kron(eyeW, w1[:, :, 0, 0].T.astype(f32)).astype(bf16)   # (W*Cin,  W*Cmid)
    w3_bd = jnp.kron(eyeW, w3[:, :, 0, 0].T.astype(f32)).astype(bf16)   # (W*Cmid, W*Cout)

    # 3x3 conv: per-kh block-tridiagonal band matrices (all three kw taps folded),
    # stacked along K so the kernel issues a single K = 3*W*Cmid matmul.
    w2hwio = jnp.transpose(w2, (2, 3, 1, 0)).astype(f32)                 # (kh, kw, ci, co)

    def band(kh):
        m = jnp.zeros((W * Cmid, W * Cmid), f32)
        for kw in range(3):
            m = m + jnp.kron(jnp.eye(W, k=1 - kw, dtype=f32), w2hwio[kh, kw])
        return m

    band_all = jnp.concatenate([band(0), band(1), band(2)], axis=0).astype(bf16)

    # BN thin reduce (1/NHW folded) and broadcast matrices.
    r_mid = jnp.kron(jnp.ones((W, 1), f32), jnp.eye(Cmid, dtype=f32)) / nhw   # (W*Cmid, Cmid)
    b_mid = jnp.kron(jnp.ones((1, W), f32), jnp.eye(Cmid, dtype=f32))         # (Cmid, W*Cmid)
    r_out = jnp.kron(jnp.ones((W, 1), f32), jnp.eye(Cout, dtype=f32)) / nhw   # (W*Cout, Cout)
    b_out = jnp.kron(jnp.ones((1, W), f32), jnp.eye(Cout, dtype=f32))         # (Cout, W*Cout)

    # Packed per-channel BN affine parameters (one operand per channel width).
    bn_mid = jnp.stack([g1, be1, g2, be2]).astype(f32)   # (4, Cmid): g1, be1, g2, be2
    bn_out = jnp.stack([g3, be3]).astype(f32)            # (2, Cout): g3, be3

    consts = (w1_bd, band_all, w3_bd, r_mid, b_mid, r_out, b_out, bn_mid, bn_out)

    kernel = _make_kernel(H)
    vmem = pl.BlockSpec(memory_space=pltpu.MemorySpace.VMEM)

    @jax.jit
    def run(x_nchw, consts):
        (w1_bd, band_all, w3_bd, r_mid, b_mid, r_out, b_out, bn_mid, bn_out) = consts
        # NHWC, then fold W into the lane axis -> lane-dense (M, W*C) slab
        # (last dim a multiple of 128 => unmasked vld/vst).
        x2d = jnp.transpose(x_nchw, (0, 2, 3, 1)).reshape(M, W * Cin).astype(jnp.float32)
        out2d = pl.pallas_call(
            kernel,
            out_shape=jax.ShapeDtypeStruct((M, W * Cout), jnp.float32),
            in_specs=[vmem] * 10,
            out_specs=vmem,
            input_output_aliases={0: 0},   # Cin == Cout: reuse the x slab's buffer
        )(x2d, w1_bd, band_all, w3_bd, r_mid, b_mid, r_out, b_out, bn_mid, bn_out)
        return jnp.transpose(out2d.reshape(N, H, W, Cout), (0, 3, 1, 2))   # -> NCHW

    return lambda x_nchw: run(x_nchw, consts)


# ---------------- pure-JAX reference (for correctness check) ------------------
def bottle_block_ref(x_nchw, params):
    (w1, b1, g1, be1, w2, b2, g2, be2, w3, b3, g3, be3) = params
    x = jnp.transpose(x_nchw, (0, 2, 3, 1))

    def conv(x, w, b, pad):
        wh = jnp.transpose(w, (2, 3, 1, 0))          # OIHW -> HWIO
        y = lax.conv_general_dilated(x, wh, (1, 1), [(pad, pad), (pad, pad)],
                                     dimension_numbers=('NHWC', 'HWIO', 'NHWC'),
                                     precision=lax.Precision.HIGHEST)
        return y + b

    def bn(y, g, be):
        m = jnp.mean(y, axis=(0, 1, 2), keepdims=True)
        v = jnp.mean((y - m) ** 2, axis=(0, 1, 2), keepdims=True)
        return (y - m) / jnp.sqrt(v + EPS) * g + be

    idn = x
    y = jax.nn.relu(bn(conv(x, w1, b1, 0), g1, be1))
    y = jax.nn.relu(bn(conv(y, w2, b2, 1), g2, be2))
    y = bn(conv(y, w3, b3, 0), g3, be3)
    y = jax.nn.relu(y + idn)
    return jnp.transpose(y, (0, 3, 1, 2))


if __name__ == "__main__":
    # BottleBlock(input_channel=16, output_channel=4) -> expansion 4 => Cout = 16 = Cin.
    N, Cin, H, W = 2, 16, 16, 16
    Cmid, Cout = 4, 16

    key = jax.random.PRNGKey(0)
    ks = jax.random.split(key, 13)

    x = jax.random.normal(ks[0], (N, Cin, H, W), jnp.float32)

    params = (
        0.2 * jax.random.normal(ks[1], (Cmid, Cin, 1, 1), jnp.float32),   # w1
        0.1 * jax.random.normal(ks[2], (Cmid,), jnp.float32),             # b1
        1.0 + 0.1 * jax.random.normal(ks[3], (Cmid,), jnp.float32),       # gamma1
        0.1 * jax.random.normal(ks[4], (Cmid,), jnp.float32),             # beta1
        0.2 * jax.random.normal(ks[5], (Cmid, Cmid, 3, 3), jnp.float32),  # w2
        0.1 * jax.random.normal(ks[6], (Cmid,), jnp.float32),             # b2
        1.0 + 0.1 * jax.random.normal(ks[7], (Cmid,), jnp.float32),       # gamma2
        0.1 * jax.random.normal(ks[8], (Cmid,), jnp.float32),             # beta2
        0.2 * jax.random.normal(ks[9], (Cout, Cmid, 1, 1), jnp.float32),  # w3
        0.1 * jax.random.normal(ks[10], (Cout,), jnp.float32),            # b3
        1.0 + 0.1 * jax.random.normal(ks[11], (Cout,), jnp.float32),      # gamma3
        0.1 * jax.random.normal(ks[12], (Cout,), jnp.float32),            # beta3
    )

    block = make_bottle_block(params, N, H, W)       # constants built once here
    out = jax.block_until_ready(block(x))
    ref = jax.block_until_ready(bottle_block_ref(x, params))

    assert out.shape == (N, Cout, H, W), out.shape
    err = float(jnp.max(jnp.abs(out - ref)))
    assert jnp.allclose(out, ref, rtol=5e-2, atol=5e-2), err

    print("KERNEL_OK")
</pallas_src>

<mosaic_0001>
module attributes {stable_mosaic.version = 11 : i64} {
  func.func @kernel(%arg0: memref<32x256xf32, #tpu.memory_space<vmem>>, %arg1: memref<256x64xbf16, #tpu.memory_space<vmem>>, %arg2: memref<192x64xbf16, #tpu.memory_space<vmem>>, %arg3: memref<64x256xbf16, #tpu.memory_space<vmem>>, %arg4: memref<64x4xf32, #tpu.memory_space<vmem>>, %arg5: memref<4x64xf32, #tpu.memory_space<vmem>>, %arg6: memref<256x16xf32, #tpu.memory_space<vmem>>, %arg7: memref<16x256xf32, #tpu.memory_space<vmem>>, %arg8: memref<4x4xf32, #tpu.memory_space<vmem>>, %arg9: memref<2x16xf32, #tpu.memory_space<vmem>>, %arg10: memref<32x256xf32, #tpu.memory_space<vmem>>) attributes {dimension_semantics = [], scalar_prefetch = 0 : i64, scratch_operands = 0 : i64, tpu.core_type = #tpu.core_type<tc>} {
    %c0 = arith.constant 0 : index
    %c0_0 = arith.constant 0 : index
    %0 = vector.load %arg0[%c0, %c0_0] : memref<32x256xf32, #tpu.memory_space<vmem>>, vector<32x256xf32>
    %1 = arith.truncf %0 : vector<32x256xf32> to vector<32x256xbf16>
    %c0_1 = arith.constant 0 : index
    %c0_2 = arith.constant 0 : index
    %2 = vector.load %arg1[%c0_1, %c0_2] : memref<256x64xbf16, #tpu.memory_space<vmem>>, vector<256x64xbf16>
    %cst = arith.constant dense<0.000000e+00> : vector<32x64xf32>
    %3 = tpu.matmul %1, %2, %cst {dimension_numbers = #tpu.dot_dimension_numbers<[1], [0], [0], [1], [0, 0, 1, 1], [], []>} : vector<32x256xbf16>, vector<256x64xbf16>, vector<32x64xf32> -> vector<32x64xf32>
    %c0_3 = arith.constant 0 : index
    %c0_4 = arith.constant 0 : index
    %4 = vector.load %arg8[%c0_3, %c0_4] : memref<4x4xf32, #tpu.memory_space<vmem>>, vector<1x4xf32>
    %c1 = arith.constant 1 : index
    %c0_5 = arith.constant 0 : index
    %5 = vector.load %arg8[%c1, %c0_5] : memref<4x4xf32, #tpu.memory_space<vmem>>, vector<1x4xf32>
    %cst_6 = arith.constant dense<0.000000e+00> : vector<64xf32>
    %6 = vector.multi_reduction <add>, %3, %cst_6 [0] : vector<32x64xf32> to vector<64xf32>
    %7 = vector.shape_cast %6 : vector<64xf32> to vector<1x64xf32>
    %8 = arith.mulf %3, %3 : vector<32x64xf32>
    %cst_7 = arith.constant dense<0.000000e+00> : vector<64xf32>
    %9 = vector.multi_reduction <add>, %8, %cst_7 [0] : vector<32x64xf32> to vector<64xf32>
    %10 = vector.shape_cast %9 : vector<64xf32> to vector<1x64xf32>
    %11 = tpu.concatenate %7, %10 in 0 : vector<1x64xf32>, vector<1x64xf32> -> vector<2x64xf32>
    %c0_8 = arith.constant 0 : index
    %c0_9 = arith.constant 0 : index
    %12 = vector.load %arg4[%c0_8, %c0_9] : memref<64x4xf32, #tpu.memory_space<vmem>>, vector<64x4xf32>
    %cst_10 = arith.constant dense<0.000000e+00> : vector<2x4xf32>
    %13 = tpu.matmul %11, %12, %cst_10 {dimension_numbers = #tpu.dot_dimension_numbers<[1], [0], [0], [1], [0, 0, 1, 1], [], []>} : vector<2x64xf32>, vector<64x4xf32>, vector<2x4xf32> -> vector<2x4xf32>
    %14 = vector.extract_strided_slice %13 {offsets = [0, 0], sizes = [1, 4], strides = [1, 1]} : vector<2x4xf32> to vector<1x4xf32>
    %15 = vector.extract_strided_slice %13 {offsets = [1, 0], sizes = [1, 4], strides = [1, 1]} : vector<2x4xf32> to vector<1x4xf32>
    %16 = arith.mulf %14, %14 : vector<1x4xf32>
    %17 = arith.subf %15, %16 : vector<1x4xf32>
    %cst_11 = arith.constant 9.99999974E-6 : f32
    %18 = vector.broadcast %cst_11 : f32 to vector<1x4xf32>
    %19 = arith.addf %17, %18 : vector<1x4xf32>
    %20 = math.rsqrt %19 : vector<1x4xf32>
    %21 = arith.mulf %20, %4 : vector<1x4xf32>
    %22 = arith.mulf %14, %21 : vector<1x4xf32>
    %23 = arith.subf %5, %22 : vector<1x4xf32>
    %24 = tpu.concatenate %21, %23 in 0 : vector<1x4xf32>, vector<1x4xf32> -> vector<2x4xf32>
    %c0_12 = arith.constant 0 : index
    %c0_13 = arith.constant 0 : index
    %25 = vector.load %arg5[%c0_12, %c0_13] : memref<4x64xf32, #tpu.memory_space<vmem>>, vector<4x64xf32>
    %cst_14 = arith.constant dense<0.000000e+00> : vector<2x64xf32>
    %26 = tpu.matmul %24, %25, %cst_14 {dimension_numbers = #tpu.dot_dimension_numbers<[1], [0], [0], [1], [0, 0, 1, 1], [], []>} : vector<2x4xf32>, vector<4x64xf32>, vector<2x64xf32> -> vector<2x64xf32>
    %27 = vector.extract_strided_slice %26 {offsets = [0, 0], sizes = [1, 64], strides = [1, 1]} : vector<2x64xf32> to vector<1x64xf32>
    %28 = vector.broadcast %27 : vector<1x64xf32> to vector<32x64xf32>
    %29 = arith.mulf %3, %28 : vector<32x64xf32>
    %30 = vector.extract_strided_slice %26 {offsets = [1, 0], sizes = [1, 64], strides = [1, 1]} : vector<2x64xf32> to vector<1x64xf32>
    %31 = vector.broadcast %30 : vector<1x64xf32> to vector<32x64xf32>
    %32 = arith.addf %29, %31 : vector<32x64xf32>
    %cst_15 = arith.constant 0.000000e+00 : f32
    %33 = vector.broadcast %cst_15 : f32 to vector<32x64xf32>
    %34 = arith.maximumf %32, %33 : vector<32x64xf32>
    %35 = tpu.iota {dimensions = array<i32: 0>} : vector<32x64xi32>
    %c16_i32 = arith.constant 16 : i32
    %c0_i32 = arith.constant 0 : i32
    %36 = arith.cmpi eq, %c16_i32, %c0_i32 : i32
    %c1_i32 = arith.constant 1 : i32
    %37 = arith.select %36, %c1_i32, %c16_i32 : i32
    %38 = vector.broadcast %37 : i32 to vector<32x64xi32>
    %39 = arith.remsi %35, %38 : vector<32x64xi32>
    %c0_i32_16 = arith.constant 0 : i32
    %40 = vector.broadcast %c0_i32_16 : i32 to vector<32x64xi32>
    %41 = arith.cmpi ne, %39, %40 : vector<32x64xi32>
    %c0_i32_17 = arith.constant 0 : i32
    %42 = vector.broadcast %c0_i32_17 : i32 to vector<32x64xi32>
    %43 = arith.cmpi slt, %39, %42 : vector<32x64xi32>
    %c0_i32_18 = arith.constant 0 : i32
    %44 = arith.cmpi slt, %37, %c0_i32_18 : i32
    %45 = vector.broadcast %44 : i1 to vector<32x64xi1>
    %46 = vector.broadcast %45 : vector<32x64xi1> to vector<32x64xi1>
    %47 = arith.xori %43, %46 : vector<32x64xi1>
    %48 = arith.andi %47, %41 : vector<32x64xi1>
    %49 = vector.broadcast %37 : i32 to vector<32x64xi32>
    %50 = arith.addi %39, %49 : vector<32x64xi32>
    %51 = arith.select %48, %50, %39 : vector<32x64xi1>, vector<32x64xi32>
    %c0_i32_19 = arith.constant 0 : i32
    %52 = vector.broadcast %c0_i32_19 : i32 to vector<32x64xi32>
    %53 = arith.cmpi ne, %51, %52 : vector<32x64xi32>
    %c1_i32_20 = arith.constant 1 : i32
    %54 = tpu.dynamic_rotate %34 by %c1_i32_20 dim 0 : vector<32x64xf32>, i32 -> vector<32x64xf32>
    %cst_21 = arith.constant 0.000000e+00 : f32
    %55 = vector.broadcast %cst_21 : f32 to vector<32x64xf32>
    %56 = arith.select %53, %54, %55 : vector<32x64xi1>, vector<32x64xf32>
    %c15_i32 = arith.constant 15 : i32
    %57 = vector.broadcast %c15_i32 : i32 to vector<32x64xi32>
    %58 = arith.cmpi ne, %51, %57 : vector<32x64xi32>
    %c31_i32 = arith.constant 31 : i32
    %59 = tpu.dynamic_rotate %34 by %c31_i32 dim 0 : vector<32x64xf32>, i32 -> vector<32x64xf32>
    %cst_22 = arith.constant 0.000000e+00 : f32
    %60 = vector.broadcast %cst_22 : f32 to vector<32x64xf32>
    %61 = arith.select %58, %59, %60 : vector<32x64xi1>, vector<32x64xf32>
    %62 = tpu.concatenate %56, %34, %61 in 1 : vector<32x64xf32>, vector<32x64xf32>, vector<32x64xf32> -> vector<32x192xf32>
    %63 = arith.truncf %62 : vector<32x192xf32> to vector<32x192xbf16>
    %c0_23 = arith.constant 0 : index
    %c0_24 = arith.constant 0 : index
    %64 = vector.load %arg2[%c0_23, %c0_24] : memref<192x64xbf16, #tpu.memory_space<vmem>>, vector<192x64xbf16>
    %cst_25 = arith.constant dense<0.000000e+00> : vector<32x64xf32>
    %65 = tpu.matmul %63, %64, %cst_25 {dimension_numbers = #tpu.dot_dimension_numbers<[1], [0], [0], [1], [0, 0, 1, 1], [], []>} : vector<32x192xbf16>, vector<192x64xbf16>, vector<32x64xf32> -> vector<32x64xf32>
    %c2 = arith.constant 2 : index
    %c0_26 = arith.constant 0 : index
    %66 = vector.load %arg8[%c2, %c0_26] : memref<4x4xf32, #tpu.memory_space<vmem>>, vector<1x4xf32>
    %c3 = arith.constant 3 : index
    %c0_27 = arith.constant 0 : index
    %67 = vector.load %arg8[%c3, %c0_27] : memref<4x4xf32, #tpu.memory_space<vmem>>, vector<1x4xf32>
    %cst_28 = arith.constant dense<0.000000e+00> : vector<64xf32>
    %68 = vector.multi_reduction <add>, %65, %cst_28 [0] : vector<32x64xf32> to vector<64xf32>
    %69 = vector.shape_cast %68 : vector<64xf32> to vector<1x64xf32>
    %70 = arith.mulf %65, %65 : vector<32x64xf32>
    %cst_29 = arith.constant dense<0.000000e+00> : vector<64xf32>
    %71 = vector.multi_reduction <add>, %70, %cst_29 [0] : vector<32x64xf32> to vector<64xf32>
    %72 = vector.shape_cast %71 : vector<64xf32> to vector<1x64xf32>
    %73 = tpu.concatenate %69, %72 in 0 : vector<1x64xf32>, vector<1x64xf32> -> vector<2x64xf32>
    %c0_30 = arith.constant 0 : index
    %c0_31 = arith.constant 0 : index
    %74 = vector.load %arg4[%c0_30, %c0_31] : memref<64x4xf32, #tpu.memory_space<vmem>>, vector<64x4xf32>
    %cst_32 = arith.constant dense<0.000000e+00> : vector<2x4xf32>
    %75 = tpu.matmul %73, %74, %cst_32 {dimension_numbers = #tpu.dot_dimension_numbers<[1], [0], [0], [1], [0, 0, 1, 1], [], []>} : vector<2x64xf32>, vector<64x4xf32>, vector<2x4xf32> -> vector<2x4xf32>
    %76 = vector.extract_strided_slice %75 {offsets = [0, 0], sizes = [1, 4], strides = [1, 1]} : vector<2x4xf32> to vector<1x4xf32>
    %77 = vector.extract_strided_slice %75 {offsets = [1, 0], sizes = [1, 4], strides = [1, 1]} : vector<2x4xf32> to vector<1x4xf32>
    %78 = arith.mulf %76, %76 : vector<1x4xf32>
    %79 = arith.subf %77, %78 : vector<1x4xf32>
    %cst_33 = arith.constant 9.99999974E-6 : f32
    %80 = vector.broadcast %cst_33 : f32 to vector<1x4xf32>
    %81 = arith.addf %79, %80 : vector<1x4xf32>
    %82 = math.rsqrt %81 : vector<1x4xf32>
    %83 = arith.mulf %82, %66 : vector<1x4xf32>
    %84 = arith.mulf %76, %83 : vector<1x4xf32>
    %85 = arith.subf %67, %84 : vector<1x4xf32>
    %86 = tpu.concatenate %83, %85 in 0 : vector<1x4xf32>, vector<1x4xf32> -> vector<2x4xf32>
    %c0_34 = arith.constant 0 : index
    %c0_35 = arith.constant 0 : index
    %87 = vector.load %arg5[%c0_34, %c0_35] : memref<4x64xf32, #tpu.memory_space<vmem>>, vector<4x64xf32>
    %cst_36 = arith.constant dense<0.000000e+00> : vector<2x64xf32>
    %88 = tpu.matmul %86, %87, %cst_36 {dimension_numbers = #tpu.dot_dimension_numbers<[1], [0], [0], [1], [0, 0, 1, 1], [], []>} : vector<2x4xf32>, vector<4x64xf32>, vector<2x64xf32> -> vector<2x64xf32>
    %89 = vector.extract_strided_slice %88 {offsets = [0, 0], sizes = [1, 64], strides = [1, 1]} : vector<2x64xf32> to vector<1x64xf32>
    %90 = vector.broadcast %89 : vector<1x64xf32> to vector<32x64xf32>
    %91 = arith.mulf %65, %90 : vector<32x64xf32>
    %92 = vector.extract_strided_slice %88 {offsets = [1, 0], sizes = [1, 64], strides = [1, 1]} : vector<2x64xf32> to vector<1x64xf32>
    %93 = vector.broadcast %92 : vector<1x64xf32> to vector<32x64xf32>
    %94 = arith.addf %91, %93 : vector<32x64xf32>
    %cst_37 = arith.constant 0.000000e+00 : f32
    %95 = vector.broadcast %cst_37 : f32 to vector<32x64xf32>
    %96 = arith.maximumf %94, %95 : vector<32x64xf32>
    %97 = arith.truncf %96 : vector<32x64xf32> to vector<32x64xbf16>
    %c0_38 = arith.constant 0 : index
    %c0_39 = arith.constant 0 : index
    %98 = vector.load %arg3[%c0_38, %c0_39] : memref<64x256xbf16, #tpu.memory_space<vmem>>, vector<64x256xbf16>
    %cst_40 = arith.constant dense<0.000000e+00> : vector<32x256xf32>
    %99 = tpu.matmul %97, %98, %cst_40 {dimension_numbers = #tpu.dot_dimension_numbers<[1], [0], [0], [1], [0, 0, 1, 1], [], []>} : vector<32x64xbf16>, vector<64x256xbf16>, vector<32x256xf32> -> vector<32x256xf32>
    %c0_41 = arith.constant 0 : index
    %c0_42 = arith.constant 0 : index
    %100 = vector.load %arg9[%c0_41, %c0_42] : memref<2x16xf32, #tpu.memory_space<vmem>>, vector<1x16xf32>
    %c1_43 = arith.constant 1 : index
    %c0_44 = arith.constant 0 : index
    %101 = vector.load %arg9[%c1_43, %c0_44] : memref<2x16xf32, #tpu.memory_space<vmem>>, vector<1x16xf32>
    %cst_45 = arith.constant dense<0.000000e+00> : vector<256xf32>
    %102 = vector.multi_reduction <add>, %99, %cst_45 [0] : vector<32x256xf32> to vector<256xf32>
    %103 = vector.shape_cast %102 : vector<256xf32> to vector<1x256xf32>
    %104 = arith.mulf %99, %99 : vector<32x256xf32>
    %cst_46 = arith.constant dense<0.000000e+00> : vector<256xf32>
    %105 = vector.multi_reduction <add>, %104, %cst_46 [0] : vector<32x256xf32> to vector<256xf32>
    %106 = vector.shape_cast %105 : vector<256xf32> to vector<1x256xf32>
    %107 = tpu.concatenate %103, %106 in 0 : vector<1x256xf32>, vector<1x256xf32> -> vector<2x256xf32>
    %c0_47 = arith.constant 0 : index
    %c0_48 = arith.constant 0 : index
    %108 = vector.load %arg6[%c0_47, %c0_48] : memref<256x16xf32, #tpu.memory_space<vmem>>, vector<256x16xf32>
    %cst_49 = arith.constant dense<0.000000e+00> : vector<2x16xf32>
    %109 = tpu.matmul %107, %108, %cst_49 {dimension_numbers = #tpu.dot_dimension_numbers<[1], [0], [0], [1], [0, 0, 1, 1], [], []>} : vector<2x256xf32>, vector<256x16xf32>, vector<2x16xf32> -> vector<2x16xf32>
    %110 = vector.extract_strided_slice %109 {offsets = [0, 0], sizes = [1, 16], strides = [1, 1]} : vector<2x16xf32> to vector<1x16xf32>
    %111 = vector.extract_strided_slice %109 {offsets = [1, 0], sizes = [1, 16], strides = [1, 1]} : vector<2x16xf32> to vector<1x16xf32>
    %112 = arith.mulf %110, %110 : vector<1x16xf32>
    %113 = arith.subf %111, %112 : vector<1x16xf32>
    %cst_50 = arith.constant 9.99999974E-6 : f32
    %114 = vector.broadcast %cst_50 : f32 to vector<1x16xf32>
    %115 = arith.addf %113, %114 : vector<1x16xf32>
    %116 = math.rsqrt %115 : vector<1x16xf32>
    %117 = arith.mulf %116, %100 : vector<1x16xf32>
    %118 = arith.mulf %110, %117 : vector<1x16xf32>
    %119 = arith.subf %101, %118 : vector<1x16xf32>
    %120 = tpu.concatenate %117, %119 in 0 : vector<1x16xf32>, vector<1x16xf32> -> vector<2x16xf32>
    %c0_51 = arith.constant 0 : index
    %c0_52 = arith.constant 0 : index
    %121 = vector.load %arg7[%c0_51, %c0_52] : memref<16x256xf32, #tpu.memory_space<vmem>>, vector<16x256xf32>
    %cst_53 = arith.constant dense<0.000000e+00> : vector<2x256xf32>
    %122 = tpu.matmul %120, %121, %cst_53 {dimension_numbers = #tpu.dot_dimension_numbers<[1], [0], [0], [1], [0, 0, 1, 1], [], []>} : vector<2x16xf32>, vector<16x256xf32>, vector<2x256xf32> -> vector<2x256xf32>
    %123 = vector.extract_strided_slice %122 {offsets = [0, 0], sizes = [1, 256], strides = [1, 1]} : vector<2x256xf32> to vector<1x256xf32>
    %124 = vector.broadcast %123 : vector<1x256xf32> to vector<32x256xf32>
    %125 = arith.mulf %99, %124 : vector<32x256xf32>
    %126 = vector.extract_strided_slice %122 {offsets = [1, 0], sizes = [1, 256], strides = [1, 1]} : vector<2x256xf32> to vector<1x256xf32>
    %127 = vector.broadcast %126 : vector<1x256xf32> to vector<32x256xf32>
    %128 = arith.addf %125, %127 : vector<32x256xf32>
    %129 = arith.addf %128, %0 : vector<32x256xf32>
    %cst_54 = arith.constant 0.000000e+00 : f32
    %130 = vector.broadcast %cst_54 : f32 to vector<32x256xf32>
    %131 = arith.maximumf %129, %130 : vector<32x256xf32>
    %c0_55 = arith.constant 0 : index
    %c0_56 = arith.constant 0 : index
    %132 = vector.load %arg10[%c0_55, %c0_56] : memref<32x256xf32, #tpu.memory_space<vmem>>, vector<32x256xf32>
    tpu.vector_store %arg10[%c0_55, %c0_56], %131 {strides = array<i32>} : memref<32x256xf32, #tpu.memory_space<vmem>>, vector<32x256xf32>,
    return
  }
}

</mosaic_0001>

<llo_original>
// kernel: run.1
$region0: #{run.1}
  #allocation0 [shape = 'u32[]', space=smem, size = 0x4, offset = 0x4, fixed_abs, tag = 'smem constant byte address 0x4 - core index']
  #allocation1 [shape = 'u32[144,128]{1,0:T(1,128)}', space=vmem, size = 0x12000, scoped, tag = 'internal scratch']
  %s0 = inlined_call_operand.vmem [shape: f32[32,256], index: 0, kind: input, shape index: {}, may-alias: {0,10}]
  %s1 = inlined_call_operand.vmem [shape: bf16[256,64], index: 1, kind: input, shape index: {}]
  %s2 = inlined_call_operand.vmem [shape: bf16[192,64], index: 2, kind: input, shape index: {}]
  %s3 = inlined_call_operand.vmem [shape: bf16[64,256], index: 3, kind: input, shape index: {}]
  %s4 = inlined_call_operand.vmem [shape: f32[64,4], index: 4, kind: input, shape index: {}]
  %s5 = inlined_call_operand.vmem [shape: f32[4,64], index: 5, kind: input, shape index: {}]
  %s6 = inlined_call_operand.vmem [shape: f32[256,16], index: 6, kind: input, shape index: {}]
  %s7 = inlined_call_operand.vmem [shape: f32[16,256], index: 7, kind: input, shape index: {}]
  %s8 = inlined_call_operand.vmem [shape: f32[4,4], index: 8, kind: input, shape index: {}]
  %s9 = inlined_call_operand.vmem [shape: f32[2,16], index: 9, kind: input, shape index: {}]
  %s10 = inlined_call_operand.vmem [shape: f32[32,256], index: 10, kind: output, shape index: {}, may-alias: {0,10}]
  %s11 = sld [smem:[#allocation0]]
  $region50: #{run.1} parent=0
    _
  %s13 = ssub.s32 1, %s11
  %s14 = scalar_select 0, %s13, %s11
  // Predicated region
  $region2: #{run.1} parent=0 // pred_check
    _
  $region3: #{run.1} parent=0 // pred_check_branch
    %16 = sbr.rel (0) target = $region5
  $region4: #{run.1} parent=0 // pred_region
    _
  $region5: #{run.1} parent=0 // pred_fallthru
    _
  // Predicated region
  $region6: #{run.1} parent=0 // pred_check
    _
  $region7: #{run.1} parent=0 // pred_check_branch
    %18 = sbr.rel (0) target = $region9
  $region8: #{run.1} parent=0 // pred_region
    _
  $region9: #{run.1} parent=0 // pred_fallthru
    _
  // Predicated region
  $region10: #{run.1} parent=0 // pred_check
    _
  $region11: #{run.1} parent=0 // pred_check_branch
    %20 = sbr.rel (0) target = $region13
  $region12: #{run.1} parent=0 // pred_region
    _
  $region13: #{run.1} parent=0 // pred_fallthru
    _
  // Predicated region
  $region14: #{run.1} parent=0 // pred_check
    _
  $region15: #{run.1} parent=0 // pred_check_branch
    %22 = sbr.rel (0) target = $region17
  $region16: #{run.1} parent=0 // pred_region
    _
  $region17: #{run.1} parent=0 // pred_fallthru
    _
  // Predicated region
  $region18: #{run.1} parent=0 // pred_check
    _
  $region19: #{run.1} parent=0 // pred_check_branch
    %24 = sbr.rel (0) target = $region21
  $region20: #{run.1} parent=0 // pred_region
    _
  $region21: #{run.1} parent=0 // pred_fallthru
    _
  // Predicated region
  $region22: #{run.1} parent=0 // pred_check
    _
  $region23: #{run.1} parent=0 // pred_check_branch
    %26 = sbr.rel (0) target = $region25
  $region24: #{run.1} parent=0 // pred_region
    _
  $region25: #{run.1} parent=0 // pred_fallthru
    _
  // Predicated region
  $region26: #{run.1} parent=0 // pred_check
    _
  $region27: #{run.1} parent=0 // pred_check_branch
    %28 = sbr.rel (0) target = $region29
  $region28: #{run.1} parent=0 // pred_region
    _
  $region29: #{run.1} parent=0 // pred_fallthru
    _
  // Predicated region
  $region30: #{run.1} parent=0 // pred_check
    _
  $region31: #{run.1} parent=0 // pred_check_branch
    %30 = sbr.rel (0) target = $region33
  $region32: #{run.1} parent=0 // pred_region
    _
  $region33: #{run.1} parent=0 // pred_fallthru
    _
  // Predicated region
  $region34: #{run.1} parent=0 // pred_check
    _
  $region35: #{run.1} parent=0 // pred_check_branch
    %32 = sbr.rel (0) target = $region37
  $region36: #{run.1} parent=0 // pred_region
    _
  $region37: #{run.1} parent=0 // pred_fallthru
    _
  // Predicated region
  $region38: #{run.1} parent=0 // pred_check
    _
  $region39: #{run.1} parent=0 // pred_check_branch
    %34 = sbr.rel (0) target = $region41
  $region40: #{run.1} parent=0 // pred_region
    _
  $region41: #{run.1} parent=0 // pred_fallthru
    _
  %v36 = vld [vmem:[%s0] sm:$0xff]
  %v37 = vld [vmem:[%s0 + $0x8] sm:$0xff]
  %v38 = vld [vmem:[%s0 + $0x10] sm:$0xff]
  %v39 = vld [vmem:[%s0 + $0x18] sm:$0xff]
  %v40 = vld [vmem:[%s0 + $0x20] sm:$0xff]
  %v41 = vld [vmem:[%s0 + $0x28] sm:$0xff]
  %v42 = vld [vmem:[%s0 + $0x30] sm:$0xff]
  %v43 = vld [vmem:[%s0 + $0x38] sm:$0xff]
  %v44 = vpack.c.bf16 %v38, %v36
  %v45 = vpack.c.bf16 %v39, %v37
  %v46 = vpack.c.bf16 %v42, %v40
  %v47 = vpack.c.bf16 %v43, %v41
  %v48 = vld [vmem:[%s1] sm:$0xf]
  %v49 = vld [vmem:[%s1 + $0x4] sm:$0xf]
  %v50 = vld [vmem:[%s1 + $0x8] sm:$0xf]
  %v51 = vld [vmem:[%s1 + $0xc] sm:$0xf]
  %v52 = vld [vmem:[%s1 + $0x10] sm:$0xf]
  %v53 = vld [vmem:[%s1 + $0x14] sm:$0xf]
  %v54 = vld [vmem:[%s1 + $0x18] sm:$0xf]
  %v55 = vld [vmem:[%s1 + $0x1c] sm:$0xf]
  %v56 = vld [vmem:[%s1 + $0x20] sm:$0xf]
  %v57 = vld [vmem:[%s1 + $0x24] sm:$0xf]
  %v58 = vld [vmem:[%s1 + $0x28] sm:$0xf]
  %v59 = vld [vmem:[%s1 + $0x2c] sm:$0xf]
  %v60 = vld [vmem:[%s1 + $0x30] sm:$0xf]
  %v61 = vld [vmem:[%s1 + $0x34] sm:$0xf]
  %v62 = vld [vmem:[%s1 + $0x38] sm:$0xf]
  %v63 = vld [vmem:[%s1 + $0x3c] sm:$0xf]
  %v64 = vld [vmem:[%s1 + $0x40] sm:$0xf]
  %v65 = vld [vmem:[%s1 + $0x44] sm:$0xf]
  %v66 = vld [vmem:[%s1 + $0x48] sm:$0xf]
  %v67 = vld [vmem:[%s1 + $0x4c] sm:$0xf]
  %v68 = vld [vmem:[%s1 + $0x50] sm:$0xf]
  %v69 = vld [vmem:[%s1 + $0x54] sm:$0xf]
  %v70 = vld [vmem:[%s1 + $0x58] sm:$0xf]
  %v71 = vld [vmem:[%s1 + $0x5c] sm:$0xf]
  %v72 = vld [vmem:[%s1 + $0x60] sm:$0xf]
  %v73 = vld [vmem:[%s1 + $0x64] sm:$0xf]
  %v74 = vld [vmem:[%s1 + $0x68] sm:$0xf]
  %v75 = vld [vmem:[%s1 + $0x6c] sm:$0xf]
  %v76 = vld [vmem:[%s1 + $0x70] sm:$0xf]
  %v77 = vld [vmem:[%s1 + $0x74] sm:$0xf]
  %v78 = vld [vmem:[%s1 + $0x78] sm:$0xf]
  %v79 = vld [vmem:[%s1 + $0x7c] sm:$0xf]
  %v112 = vunpack.c.l.b16 %v48
  %v113 = vunpack.c.l.b16 %v49
  %v114 = vunpack.c.l.b16 %v50
  %v115 = vunpack.c.l.b16 %v51
  %v116 = vunpack.c.l.b16 %v52
  %v117 = vunpack.c.l.b16 %v53
  %v118 = vunpack.c.l.b16 %v54
  %v119 = vunpack.c.l.b16 %v55
  %v120 = vunpack.c.l.b16 %v56
  %v121 = vunpack.c.l.b16 %v57
  %v122 = vunpack.c.l.b16 %v58
  %v123 = vunpack.c.l.b16 %v59
  %v124 = vunpack.c.l.b16 %v60
  %v125 = vunpack.c.l.b16 %v61
  %v126 = vunpack.c.l.b16 %v62
  %v127 = vunpack.c.l.b16 %v63
  %v128 = vunpack.c.l.b16 %v64
  %v129 = vunpack.c.l.b16 %v65
  %v130 = vunpack.c.l.b16 %v66
  %v131 = vunpack.c.l.b16 %v67
  %v132 = vunpack.c.l.b16 %v68
  %v133 = vunpack.c.l.b16 %v69
  %v134 = vunpack.c.l.b16 %v70
  %v135 = vunpack.c.l.b16 %v71
  %v136 = vunpack.c.l.b16 %v72
  %v137 = vunpack.c.l.b16 %v73
  %v138 = vunpack.c.l.b16 %v74
  %v139 = vunpack.c.l.b16 %v75
  %v140 = vunpack.c.l.b16 %v76
  %v141 = vunpack.c.l.b16 %v77
  %v142 = vunpack.c.l.b16 %v78
  %v143 = vunpack.c.l.b16 %v79
  %v144 = vpack.c.b16 %v113, %v112
  %v145 = vpack.c.b16 %v115, %v114
  %v146 = vpack.c.b16 %v117, %v116
  %v147 = vpack.c.b16 %v119, %v118
  %v148 = vpack.c.b16 %v121, %v120
  %v149 = vpack.c.b16 %v123, %v122
  %v150 = vpack.c.b16 %v125, %v124
  %v151 = vpack.c.b16 %v127, %v126
  %v152 = vpack.c.b16 %v129, %v128
  %v153 = vpack.c.b16 %v131, %v130
  %v154 = vpack.c.b16 %v133, %v132
  %v155 = vpack.c.b16 %v135, %v134
  %v156 = vpack.c.b16 %v137, %v136
  %v157 = vpack.c.b16 %v139, %v138
  %v158 = vpack.c.b16 %v141, %v140
  %v159 = vpack.c.b16 %v143, %v142
  %176 = vmatprep.subr.bf16.mxu0 0
  %177 = vmatpush1.bf16.msra.mxu0 %v144
  %178 = vmatprep.subr.bf16.mxu0 0
  %179 = vmatpush1.bf16.msra.mxu0 %v145
  %180 = vmatprep.subr.bf16.mxu0 0
  %181 = vmatpush1.bf16.msra.mxu0 %v146
  %182 = vmatprep.subr.bf16.mxu0 0
  %183 = vmatpush1.bf16.msra.mxu0 %v147
  %184 = vmatprep.subr.bf16.mxu0 0
  %185 = vmatpush1.bf16.msra.mxu0 %v148
  %186 = vmatprep.subr.bf16.mxu0 0
  %187 = vmatpush1.bf16.msra.mxu0 %v149
  %188 = vmatprep.subr.bf16.mxu0 0
  %189 = vmatpush1.bf16.msra.mxu0 %v150
  %190 = vmatprep.subr.bf16.mxu0 0
  %191 = vmatpush1.bf16.msra.mxu0 %v151
  %192 = vmatprep.subr.bf16.mxu0 0
  %193 = vmatpush1.bf16.msra.mxu0 %v152
  %194 = vmatprep.subr.bf16.mxu0 0
  %195 = vmatpush1.bf16.msra.mxu0 %v153
  %196 = vmatprep.subr.bf16.mxu0 0
  %197 = vmatpush1.bf16.msra.mxu0 %v154
  %198 = vmatprep.subr.bf16.mxu0 0
  %199 = vmatpush1.bf16.msra.mxu0 %v155
  %200 = vmatprep.subr.bf16.mxu0 0
  %201 = vmatpush1.bf16.msra.mxu0 %v156
  %202 = vmatprep.subr.bf16.mxu0 0
  %203 = vmatpush1.bf16.msra.mxu0 %v157
  %204 = vmatprep.subr.bf16.mxu0 0
  %205 = vmatpush1.bf16.msra.mxu0 %v158
  %206 = vmatprep.subr.bf16.mxu0 0
  %207 = vmatpush1.bf16.msra.mxu0 %v159
  %208 = vmatprep.mubr.bf16.mxu0 %v45
  %209 = vmatmul.mubr.bf16.gmra.mrb[0].mxu0 %v44
  %v210 = vpop.f32.mrb[0].mxu0
  %v211 = vadd.f32 0.0, %v210
  %v212 = vpop.f32.mrb[0].mxu0
  %v213 = vpop.f32.mrb[0].mxu0
  %v214 = vadd.f32 0.0, %v213
  %v215 = vpop.f32.mrb[0].mxu0
  %216 = vmatprep.mubr.bf16.mxu0 %v47
  %217 = vmatmul.mubr.bf16.gmra.mrb[0].mxu0 %v46
  %v218 = vpop.f32.mrb[0].mxu0
  %v219 = vadd.f32 0.0, %v218
  %v220 = vpop.f32.mrb[0].mxu0
  %v221 = vpop.f32.mrb[0].mxu0
  %v222 = vadd.f32 0.0, %v221
  %v223 = vpop.f32.mrb[0].mxu0
  %224 = vdwg.mxu0
  %v225 = vld [vmem:[%s8] sm:$0x1]
  %v226 = vld [vmem:[%s8 + $0x1] sm:$0x1]
  %vm227 = vcmask 523264
  %v228 = vsel %vm227, %v211, 0.0
  %v229 = vsel %vm227, %v214, 0.0
  %v230 = vadd.f32 %v228, %v229
  %v231 = vsel %vm227, %v219, 0.0
  %v232 = vadd.f32 %v230, %v231
  %v233 = vsel %vm227, %v222, 0.0
  %v234 = vadd.f32 %v232, %v233
  %v235 = vrot.slane %v234, 4
  %v236 = vadd.f32 %v234, %v235
  %v237 = vrot.slane %v236, 2
  %v238 = vadd.f32 %v236, %v237
  %v239 = vrot.slane %v238, 1
  %v240 = vadd.f32 %v238, %v239
  %v241 = vmul.f32 %v211, %v211
  %v242 = vmul.f32 %v214, %v214
  %v243 = vmul.f32 %v219, %v219
  %v244 = vmul.f32 %v222, %v222
  %v245 = vsel %vm227, %v241, 0.0
  %v246 = vsel %vm227, %v242, 0.0
  %v247 = vadd.f32 %v245, %v246
  %v248 = vsel %vm227, %v243, 0.0
  %v249 = vadd.f32 %v247, %v248
  %v250 = vsel %vm227, %v244, 0.0
  %v251 = vadd.f32 %v249, %v250
  %v252 = vrot.slane %v251, 4
  %v253 = vadd.f32 %v251, %v252
  %v254 = vrot.slane %v253, 2
  %v255 = vadd.f32 %v253, %v254
  %v256 = vrot.slane %v255, 1
  %v257 = vadd.f32 %v255, %v256
  %vm258 = vcmask 1040384
  %v259 = vsel %vm258, %v240, %v257
  %v260 = vld [vmem:[%s4] sm:$0xff]
  %v261 = vld [vmem:[%s4 + $0x8] sm:$0xff]
  %v262 = vld [vmem:[%s4 + $0x10] sm:$0xff]
  %v263 = vld [vmem:[%s4 + $0x18] sm:$0xff]
  %v264 = vld [vmem:[%s4 + $0x20] sm:$0xff]
  %v265 = vld [vmem:[%s4 + $0x28] sm:$0xff]
  %v266 = vld [vmem:[%s4 + $0x30] sm:$0xff]
  %v267 = vld [vmem:[%s4 + $0x38] sm:$0xff]
  %v269 = vsel %vm227, %v259, 0
  %271 = vmatprep.subr.mxu0 0.0
  %272 = vmatpush1.msra.mxu0 %v260
  %273 = vmatprep.subr.mxu0 0.0
  %274 = vmatpush1.msra.mxu0 %v261
  %275 = vmatprep.subr.mxu0 0.0
  %276 = vmatpush1.msra.mxu0 %v262
  %277 = vmatprep.subr.mxu0 0.0
  %278 = vmatpush1.msra.mxu0 %v263
  %279 = vmatprep.subr.mxu0 0.0
  %280 = vmatpush1.msra.mxu0 %v264
  %281 = vmatprep.subr.mxu0 0.0
  %282 = vmatpush1.msra.mxu0 %v265
  %283 = vmatprep.subr.mxu0 0.0
  %284 = vmatpush1.msra.mxu0 %v266
  %285 = vmatprep.subr.mxu0 0.0
  %286 = vmatpush1.msra.mxu0 %v267
  %287 = vmatprep.subr.mxu0 0.0
  %288 = vmatpush1.msra.mxu0 0.0
  %289 = vmatprep.subr.mxu0 0.0
  %290 = vmatpush1.msra.mxu0 0.0
  %291 = vmatprep.subr.mxu0 0.0
  %292 = vmatpush1.msra.mxu0 0.0
  %293 = vmatprep.subr.mxu0 0.0
  %294 = vmatpush1.msra.mxu0 0.0
  %295 = vmatprep.subr.mxu0 0.0
  %296 = vmatpush1.msra.mxu0 0.0
  %297 = vmatprep.subr.mxu0 0.0
  %298 = vmatpush1.msra.mxu0 0.0
  %299 = vmatprep.subr.mxu0 0.0
  %300 = vmatpush1.msra.mxu0 0.0
  %301 = vmatprep.subr.mxu0 0.0
  %302 = vmatpush1.msra.mxu0 0.0
  %303 = vmatprep.subr.mxu0 0.0
  %304 = vmatpush1.msra.mxu0 0.0
  %305 = vmatprep.subr.mxu0 0.0
  %306 = vmatpush1.msra.mxu0 0.0
  %307 = vmatprep.subr.mxu0 0.0
  %308 = vmatpush1.msra.mxu0 0.0
  %309 = vmatprep.subr.mxu0 0.0
  %310 = vmatpush1.msra.mxu0 0.0
  %311 = vmatprep.subr.mxu0 0.0
  %312 = vmatpush1.msra.mxu0 0.0
  %313 = vmatprep.subr.mxu0 0.0
  %314 = vmatpush1.msra.mxu0 0.0
  %315 = vmatprep.subr.mxu0 0.0
  %316 = vmatpush1.msra.mxu0 0.0
  %317 = vmatprep.subr.mxu0 0.0
  %318 = vmatpush1.msra.mxu0 0.0
  %319 = vmatprep.subr.mxu0 0.0
  %320 = vmatpush1.msra.mxu0 0.0
  %321 = vmatprep.subr.mxu0 0.0
  %322 = vmatpush1.msra.mxu0 0.0
  %323 = vmatprep.subr.mxu0 0.0
  %324 = vmatpush1.msra.mxu0 0.0
  %325 = vmatprep.subr.mxu0 0.0
  %326 = vmatpush1.msra.mxu0 0.0
  %327 = vmatprep.subr.mxu0 0.0
  %328 = vmatpush1.msra.mxu0 0.0
  %329 = vmatprep.subr.mxu0 0.0
  %330 = vmatpush1.msra.mxu0 0.0
  %331 = vmatprep.subr.mxu0 0.0
  %332 = vmatpush1.msra.mxu0 0.0
  %333 = vmatprep.subr.mxu0 0.0
  %334 = vmatpush1.msra.mxu0 0.0
  %335 = vmatprep.mubr.f32.mxu0 0.0
  %336 = vmatmul.mubr.f32.gmra.mrb[0].mxu0 %v269
  %v337 = vpop.f32.mrb[0].mxu0
  %v338 = vadd.f32 0.0, %v337
  %v339 = vpop.f32.mrb[0].mxu0
  %340 = vdwg.mxu0
  %v341 = vmul.f32 %v338, %v338
  %v343 = vrot.slane %v341, 7
  %v345 = vsub.f32 %v338, %v343
  %v346 = vadd.f32 %v345, 1e-05
  %v347 = vrsqrt.pop %v346
  %v349 = vrot.slane %v225, 7
  %v351 = vmul.f32 %v347, %v349
  %v353 = vrot.slane %v351, 1
  %v355 = vmul.f32 %v338, %v353
  %v356 = vsub.f32 %v226, %v355
  %v358 = vrot.slane %v356, 7
  %v360 = vsel %vm258, %v353, %v358
  %v361 = vld [vmem:[%s5] sm:$0xf]
  %vm362 = vcmask 31744
  %v364 = vsel %vm362, %v360, 0
  %vm366 = vcmask 1043456
  %v368 = vsel %vm366, %v361, 0
  %370 = vmatprep.subr.mxu0 0.0
  %371 = vmatpush1.msra.mxu0 %v368
  %372 = vmatprep.subr.mxu0 0.0
  %373 = vmatpush1.msra.mxu0 0.0
  %374 = vmatprep.subr.mxu0 0.0
  %375 = vmatpush1.msra.mxu0 0.0
  %376 = vmatprep.subr.mxu0 0.0
  %377 = vmatpush1.msra.mxu0 0.0
  %378 = vmatprep.subr.mxu0 0.0
  %379 = vmatpush1.msra.mxu0 0.0
  %380 = vmatprep.subr.mxu0 0.0
  %381 = vmatpush1.msra.mxu0 0.0
  %382 = vmatprep.subr.mxu0 0.0
  %383 = vmatpush1.msra.mxu0 0.0
  %384 = vmatprep.subr.mxu0 0.0
  %385 = vmatpush1.msra.mxu0 0.0
  %386 = vmatprep.subr.mxu0 0.0
  %387 = vmatpush1.msra.mxu0 0.0
  %388 = vmatprep.subr.mxu0 0.0
  %389 = vmatpush1.msra.mxu0 0.0
  %390 = vmatprep.subr.mxu0 0.0
  %391 = vmatpush1.msra.mxu0 0.0
  %392 = vmatprep.subr.mxu0 0.0
  %393 = vmatpush1.msra.mxu0 0.0
  %394 = vmatprep.subr.mxu0 0.0
  %395 = vmatpush1.msra.mxu0 0.0
  %396 = vmatprep.subr.mxu0 0.0
  %397 = vmatpush1.msra.mxu0 0.0
  %398 = vmatprep.subr.mxu0 0.0
  %399 = vmatpush1.msra.mxu0 0.0
  %400 = vmatprep.subr.mxu0 0.0
  %401 = vmatpush1.msra.mxu0 0.0
  %402 = vmatprep.subr.mxu0 0.0
  %403 = vmatpush1.msra.mxu0 0.0
  %404 = vmatprep.subr.mxu0 0.0
  %405 = vmatpush1.msra.mxu0 0.0
  %406 = vmatprep.subr.mxu0 0.0
  %407 = vmatpush1.msra.mxu0 0.0
  %408 = vmatprep.subr.mxu0 0.0
  %409 = vmatpush1.msra.mxu0 0.0
  %410 = vmatprep.subr.mxu0 0.0
  %411 = vmatpush1.msra.mxu0 0.0
  %412 = vmatprep.subr.mxu0 0.0
  %413 = vmatpush1.msra.mxu0 0.0
  %414 = vmatprep.subr.mxu0 0.0
  %415 = vmatpush1.msra.mxu0 0.0
  %416 = vmatprep.subr.mxu0 0.0
  %417 = vmatpush1.msra.mxu0 0.0
  %418 = vmatprep.subr.mxu0 0.0
  %419 = vmatpush1.msra.mxu0 0.0
  %420 = vmatprep.subr.mxu0 0.0
  %421 = vmatpush1.msra.mxu0 0.0
  %422 = vmatprep.subr.mxu0 0.0
  %423 = vmatpush1.msra.mxu0 0.0
  %424 = vmatprep.subr.mxu0 0.0
  %425 = vmatpush1.msra.mxu0 0.0
  %426 = vmatprep.subr.mxu0 0.0
  %427 = vmatpush1.msra.mxu0 0.0
  %428 = vmatprep.subr.mxu0 0.0
  %429 = vmatpush1.msra.mxu0 0.0
  %430 = vmatprep.subr.mxu0 0.0
  %431 = vmatpush1.msra.mxu0 0.0
  %432 = vmatprep.subr.mxu0 0.0
  %433 = vmatpush1.msra.mxu0 0.0
  %434 = vmatprep.mubr.f32.mxu0 0.0
  %435 = vmatmul.mubr.f32.gmra.mrb[0].mxu0 %v364
  %v436 = vpop.f32.mrb[0].mxu0
  %v437 = vadd.f32 0.0, %v436
  %v438 = vpop.f32.mrb[0].mxu0
  %439 = vdwg.mxu0
  %v440 = vlaneseq
  %v441 = vshrl.u32 %v440, 7
  %v442 = vsub.s32 0, %v441
  %v443 = vrot.slane %v437, %v442
  %v444 = vmul.f32 %v211, %v443
  %v445 = vmul.f32 %v214, %v443
  %v446 = vmul.f32 %v219, %v443
  %v447 = vmul.f32 %v222, %v443
  %v448 = vlaneseq
  %v449 = vshrl.u32 %v448, 7
  %v450 = vsub.s32 1, %v449
  %v451 = vrot.slane %v437, %v450
  %v452 = vadd.f32 %v444, %v451
  %v453 = vadd.f32 %v445, %v451
  %v454 = vadd.f32 %v446, %v451
  %v455 = vadd.f32 %v447, %v451
  %v456 = vmax.f32 %v452, 0.0
  %v457 = vmax.f32 %v453, 0.0
  %v458 = vmax.f32 %v454, 0.0
  %v459 = vmax.f32 %v455, 0.0
  %v460 = vlaneseq
  %v461 = vshrl.u32 %v460, 7
  %v462 = vadd.s32 %v461, 8
  %v463 = vadd.s32 %v461, 16
  %v464 = vadd.s32 %v461, 24
  %vm465 = vcmp.lt.s32.totalorder %v461, 0
  %v466 = vsub.s32 0, %v461
  %v467 = vsel %vm465, %v466, %v461
  %v468 = vshrl.u32 %v467, 4
  %v469 = vand.u32 %v467, 15
  %v470 = vsub.s32 0, %v469
  %v471 = vsel %vm465, %v470, %v469
  %vm472 = vcmp.lt.s32.totalorder %v462, 0
  %v473 = vsub.s32 0, %v462
  %v474 = vsel %vm472, %v473, %v462
  %v475 = vshrl.u32 %v474, 4
  %v476 = vand.u32 %v474, 15
  %v477 = vsub.s32 0, %v476
  %v478 = vsel %vm472, %v477, %v476
  %vm479 = vcmp.lt.s32.totalorder %v463, 0
  %v480 = vsub.s32 0, %v463
  %v481 = vsel %vm479, %v480, %v463
  %v482 = vshrl.u32 %v481, 4
  %v483 = vand.u32 %v481, 15
  %v484 = vsub.s32 0, %v483
  %v485 = vsel %vm479, %v484, %v483
  %vm486 = vcmp.lt.s32.totalorder %v464, 0
  %v487 = vsub.s32 0, %v464
  %v488 = vsel %vm486, %v487, %v464
  %v489 = vshrl.u32 %v488, 4
  %v490 = vand.u32 %v488, 15
  %v491 = vsub.s32 0, %v490
  %v492 = vsel %vm486, %v491, %v490
  %vm493 = vcmp.ne.s32.totalorder %v471, 0
  %vm494 = vcmp.ne.s32.totalorder %v478, 0
  %vm495 = vcmp.ne.s32.totalorder %v485, 0
  %vm496 = vcmp.ne.s32.totalorder %v492, 0
  %vm497 = vcmp.lt.s32.totalorder %v471, 0
  %vm498 = vcmp.lt.s32.totalorder %v478, 0
  %vm499 = vcmp.lt.s32.totalorder %v485, 0
  %vm500 = vcmp.lt.s32.totalorder %v492, 0
  %vm501 = vmand %vm497, %vm493
  %vm502 = vmand %vm498, %vm494
  %vm503 = vmand %vm499, %vm495
  %vm504 = vmand %vm500, %vm496
  %v505 = vadd.s32 %v471, 16
  %v506 = vadd.s32 %v478, 16
  %v507 = vadd.s32 %v485, 16
  %v508 = vadd.s32 %v492, 16
  %v509 = vsel %vm501, %v505, %v471
  %v510 = vsel %vm502, %v506, %v478
  %v511 = vsel %vm503, %v507, %v485
  %v512 = vsel %vm504, %v508, %v492
  %vm513 = vcmp.ne.s32.totalorder %v509, 0
  %vm514 = vcmp.ne.s32.totalorder %v510, 0
  %vm515 = vcmp.ne.s32.totalorder %v511, 0
  %vm516 = vcmp.ne.s32.totalorder %v512, 0
  %v517 = vrot.slane %v456, 7
  %v518 = vrot.slane %v457, 7
  %v519 = vrot.slane %v458, 7
  %v520 = vrot.slane %v459, 7
  %vm521 = vcmp.lt.s32.totalorder %v461, 1
  %v522 = vsel %vm521, %v519, %v520
  %v523 = vsel %vm521, %v518, %v519
  %v524 = vsel %vm521, %v517, %v518
  %v525 = vsel %vm521, %v520, %v517
  %v526 = vsel %vm513, %v525, 0.0
  %v527 = vsel %vm514, %v524, 0.0
  %v528 = vsel %vm515, %v523, 0.0
  %v529 = vsel %vm516, %v522, 0.0
  %vm530 = vcmp.ne.s32.totalorder %v509, 15
  %vm531 = vcmp.ne.s32.totalorder %v510, 15
  %vm532 = vcmp.ne.s32.totalorder %v511, 15
  %vm533 = vcmp.ne.s32.totalorder %v512, 15
  %v534 = vrot.slane %v456, 1
  %v535 = vrot.slane %v457, 1
  %v536 = vrot.slane %v458, 1
  %v537 = vrot.slane %v459, 1
  %vm538 = vcmp.lt.s32.totalorder %v461, 7
  %v539 = vsel %vm538, %v536, %v537
  %v540 = vsel %vm538, %v535, %v536
  %v541 = vsel %vm538, %v534, %v535
  %v542 = vsel %vm538, %v537, %v534
  %v543 = vsel %vm530, %v541, 0.0
  %v544 = vsel %vm531, %v540, 0.0
  %v545 = vsel %vm532, %v539, 0.0
  %v546 = vsel %vm533, %v542, 0.0
  %551 = vrot.lane.b32.xlu0 %v456, 64
  %v552 = vpop.permute.xlu0 %551
  %553 = vrot.lane.b32.xlu0 %v457, 64
  %v554 = vpop.permute.xlu0 %553
  %555 = vrot.lane.b32.xlu0 %v458, 64
  %v556 = vpop.permute.xlu0 %555
  %557 = vrot.lane.b32.xlu0 %v459, 64
  %v558 = vpop.permute.xlu0 %557
  %v563 = vsel %vm227, %v526, %v552
  %v564 = vsel %vm227, %v527, %v554
  %v565 = vsel %vm227, %v528, %v556
  %v566 = vsel %vm227, %v529, %v558
  %v567 = vpack.c.bf16 %v564, %v563
  %v568 = vpack.c.bf16 %v544, %v543
  %v569 = vpack.c.bf16 %v566, %v565
  %v570 = vpack.c.bf16 %v546, %v545
  %v571 = vld [vmem:[%s2] sm:$0xf]
  %v572 = vld [vmem:[%s2 + $0x4] sm:$0xf]
  %v573 = vld [vmem:[%s2 + $0x8] sm:$0xf]
  %v574 = vld [vmem:[%s2 + $0xc] sm:$0xf]
  %v575 = vld [vmem:[%s2 + $0x10] sm:$0xf]
  %v576 = vld [vmem:[%s2 + $0x14] sm:$0xf]
  %v577 = vld [vmem:[%s2 + $0x18] sm:$0xf]
  %v578 = vld [vmem:[%s2 + $0x1c] sm:$0xf]
  %v579 = vld [vmem:[%s2 + $0x20] sm:$0xf]
  %v580 = vld [vmem:[%s2 + $0x24] sm:$0xf]
  %v581 = vld [vmem:[%s2 + $0x28] sm:$0xf]
  %v582 = vld [vmem:[%s2 + $0x2c] sm:$0xf]
  %v583 = vld [vmem:[%s2 + $0x30] sm:$0xf]
  %v584 = vld [vmem:[%s2 + $0x34] sm:$0xf]
  %v585 = vld [vmem:[%s2 + $0x38] sm:$0xf]
  %v586 = vld [vmem:[%s2 + $0x3c] sm:$0xf]
  %v587 = vld [vmem:[%s2 + $0x40] sm:$0xf]
  %v588 = vld [vmem:[%s2 + $0x44] sm:$0xf]
  %v589 = vld [vmem:[%s2 + $0x48] sm:$0xf]
  %v590 = vld [vmem:[%s2 + $0x4c] sm:$0xf]
  %v591 = vld [vmem:[%s2 + $0x50] sm:$0xf]
  %v592 = vld [vmem:[%s2 + $0x54] sm:$0xf]
  %v593 = vld [vmem:[%s2 + $0x58] sm:$0xf]
  %v594 = vld [vmem:[%s2 + $0x5c] sm:$0xf]
  %v619 = vunpack.c.l.b16 %v571
  %v620 = vunpack.c.l.b16 %v572
  %v621 = vunpack.c.l.b16 %v573
  %v622 = vunpack.c.l.b16 %v574
  %v623 = vunpack.c.l.b16 %v575
  %v624 = vunpack.c.l.b16 %v576
  %v625 = vunpack.c.l.b16 %v577
  %v626 = vunpack.c.l.b16 %v578
  %v627 = vunpack.c.l.b16 %v579
  %v628 = vunpack.c.l.b16 %v580
  %v629 = vunpack.c.l.b16 %v581
  %v630 = vunpack.c.l.b16 %v582
  %v631 = vunpack.c.l.b16 %v583
  %v632 = vunpack.c.l.b16 %v584
  %v633 = vunpack.c.l.b16 %v585
  %v634 = vunpack.c.l.b16 %v586
  %v635 = vunpack.c.l.b16 %v587
  %v636 = vunpack.c.l.b16 %v588
  %v637 = vunpack.c.l.b16 %v589
  %v638 = vunpack.c.l.b16 %v590
  %v639 = vunpack.c.l.b16 %v591
  %v640 = vunpack.c.l.b16 %v592
  %v641 = vunpack.c.l.b16 %v593
  %v642 = vunpack.c.l.b16 %v594
  %v643 = vpack.c.b16 %v620, %v619
  %v644 = vpack.c.b16 %v622, %v621
  %v645 = vpack.c.b16 %v624, %v623
  %v646 = vpack.c.b16 %v626, %v625
  %v647 = vpack.c.b16 %v628, %v627
  %v648 = vpack.c.b16 %v630, %v629
  %v649 = vpack.c.b16 %v632, %v631
  %v650 = vpack.c.b16 %v634, %v633
  %v651 = vpack.c.b16 %v636, %v635
  %v652 = vpack.c.b16 %v638, %v637
  %v653 = vpack.c.b16 %v640, %v639
  %v654 = vpack.c.b16 %v642, %v641
  %v668 = vsel %vm227, %v568, 0
  %v671 = vsel %vm227, %v570, 0
  %673 = vmatprep.subr.bf16.mxu0 0
  %674 = vmatpush1.bf16.msra.mxu0 %v643
  %675 = vmatprep.subr.bf16.mxu0 0
  %676 = vmatpush1.bf16.msra.mxu0 %v644
  %677 = vmatprep.subr.bf16.mxu0 0
  %678 = vmatpush1.bf16.msra.mxu0 %v645
  %679 = vmatprep.subr.bf16.mxu0 0
  %680 = vmatpush1.bf16.msra.mxu0 %v646
  %681 = vmatprep.subr.bf16.mxu0 0
  %682 = vmatpush1.bf16.msra.mxu0 %v647
  %683 = vmatprep.subr.bf16.mxu0 0
  %684 = vmatpush1.bf16.msra.mxu0 %v648
  %685 = vmatprep.subr.bf16.mxu0 0
  %686 = vmatpush1.bf16.msra.mxu0 %v649
  %687 = vmatprep.subr.bf16.mxu0 0
  %688 = vmatpush1.bf16.msra.mxu0 %v650
  %689 = vmatprep.subr.bf16.mxu0 0
  %690 = vmatpush1.bf16.msra.mxu0 %v651
  %691 = vmatprep.subr.bf16.mxu0 0
  %692 = vmatpush1.bf16.msra.mxu0 %v652
  %693 = vmatprep.subr.bf16.mxu0 0
  %694 = vmatpush1.bf16.msra.mxu0 %v653
  %695 = vmatprep.subr.bf16.mxu0 0
  %696 = vmatpush1.bf16.msra.mxu0 %v654
  %697 = vmatprep.subr.bf16.mxu0 0
  %698 = vmatpush1.bf16.msra.mxu0 0
  %699 = vmatprep.subr.bf16.mxu0 0
  %700 = vmatpush1.bf16.msra.mxu0 0
  %701 = vmatprep.subr.bf16.mxu0 0
  %702 = vmatpush1.bf16.msra.mxu0 0
  %703 = vmatprep.subr.bf16.mxu0 0
  %704 = vmatpush1.bf16.msra.mxu0 0
  %705 = vmatprep.mubr.bf16.mxu0 %v668
  %706 = vmatmul.mubr.bf16.gmra.mrb[0].mxu0 %v567
  %v707 = vpop.f32.mrb[0].mxu0
  %v708 = vadd.f32 0.0, %v707
  %v709 = vpop.f32.mrb[0].mxu0
  %v710 = vpop.f32.mrb[0].mxu0
  %v711 = vadd.f32 0.0, %v710
  %v712 = vpop.f32.mrb[0].mxu0
  %713 = vmatprep.mubr.bf16.mxu0 %v671
  %714 = vmatmul.mubr.bf16.gmra.mrb[0].mxu0 %v569
  %v715 = vpop.f32.mrb[0].mxu0
  %v716 = vadd.f32 0.0, %v715
  %v717 = vpop.f32.mrb[0].mxu0
  %v718 = vpop.f32.mrb[0].mxu0
  %v719 = vadd.f32 0.0, %v718
  %v720 = vpop.f32.mrb[0].mxu0
  %721 = vdwg.mxu0
  %v722 = vld [vmem:[%s8 + $0x2] sm:$0x1]
  %v723 = vld [vmem:[%s8 + $0x3] sm:$0x1]
  %v724 = vsel %vm227, %v708, 0.0
  %v725 = vsel %vm227, %v711, 0.0
  %v726 = vadd.f32 %v724, %v725
  %v727 = vsel %vm227, %v716, 0.0
  %v728 = vadd.f32 %v726, %v727
  %v729 = vsel %vm227, %v719, 0.0
  %v730 = vadd.f32 %v728, %v729
  %v731 = vrot.slane %v730, 4
  %v732 = vadd.f32 %v730, %v731
  %v733 = vrot.slane %v732, 2
  %v734 = vadd.f32 %v732, %v733
  %v735 = vrot.slane %v734, 1
  %v736 = vadd.f32 %v734, %v735
  %v737 = vmul.f32 %v708, %v708
  %v738 = vmul.f32 %v711, %v711
  %v739 = vmul.f32 %v716, %v716
  %v740 = vmul.f32 %v719, %v719
  %v741 = vsel %vm227, %v737, 0.0
  %v742 = vsel %vm227, %v738, 0.0
  %v743 = vadd.f32 %v741, %v742
  %v744 = vsel %vm227, %v739, 0.0
  %v745 = vadd.f32 %v743, %v744
  %v746 = vsel %vm227, %v740, 0.0
  %v747 = vadd.f32 %v745, %v746
  %v748 = vrot.slane %v747, 4
  %v749 = vadd.f32 %v747, %v748
  %v750 = vrot.slane %v749, 2
  %v751 = vadd.f32 %v749, %v750
  %v752 = vrot.slane %v751, 1
  %v753 = vadd.f32 %v751, %v752
  %v754 = vsel %vm258, %v736, %v753
  %v756 = vsel %vm227, %v754, 0
  %758 = vmatprep.subr.mxu0 0.0
  %759 = vmatpush1.msra.mxu0 %v260
  %760 = vmatprep.subr.mxu0 0.0
  %761 = vmatpush1.msra.mxu0 %v261
  %762 = vmatprep.subr.mxu0 0.0
  %763 = vmatpush1.msra.mxu0 %v262
  %764 = vmatprep.subr.mxu0 0.0
  %765 = vmatpush1.msra.mxu0 %v263
  %766 = vmatprep.subr.mxu0 0.0
  %767 = vmatpush1.msra.mxu0 %v264
  %768 = vmatprep.subr.mxu0 0.0
  %769 = vmatpush1.msra.mxu0 %v265
  %770 = vmatprep.subr.mxu0 0.0
  %771 = vmatpush1.msra.mxu0 %v266
  %772 = vmatprep.subr.mxu0 0.0
  %773 = vmatpush1.msra.mxu0 %v267
  %774 = vmatprep.subr.mxu0 0.0
  %775 = vmatpush1.msra.mxu0 0.0
  %776 = vmatprep.subr.mxu0 0.0
  %777 = vmatpush1.msra.mxu0 0.0
  %778 = vmatprep.subr.mxu0 0.0
  %779 = vmatpush1.msra.mxu0 0.0
  %780 = vmatprep.subr.mxu0 0.0
  %781 = vmatpush1.msra.mxu0 0.0
  %782 = vmatprep.subr.mxu0 0.0
  %783 = vmatpush1.msra.mxu0 0.0
  %784 = vmatprep.subr.mxu0 0.0
  %785 = vmatpush1.msra.mxu0 0.0
  %786 = vmatprep.subr.mxu0 0.0
  %787 = vmatpush1.msra.mxu0 0.0
  %788 = vmatprep.subr.mxu0 0.0
  %789 = vmatpush1.msra.mxu0 0.0
  %790 = vmatprep.subr.mxu0 0.0
  %791 = vmatpush1.msra.mxu0 0.0
  %792 = vmatprep.subr.mxu0 0.0
  %793 = vmatpush1.msra.mxu0 0.0
  %794 = vmatprep.subr.mxu0 0.0
  %795 = vmatpush1.msra.mxu0 0.0
  %796 = vmatprep.subr.mxu0 0.0
  %797 = vmatpush1.msra.mxu0 0.0
  %798 = vmatprep.subr.mxu0 0.0
  %799 = vmatpush1.msra.mxu0 0.0
  %800 = vmatprep.subr.mxu0 0.0
  %801 = vmatpush1.msra.mxu0 0.0
  %802 = vmatprep.subr.mxu0 0.0
  %803 = vmatpush1.msra.mxu0 0.0
  %804 = vmatprep.subr.mxu0 0.0
  %805 = vmatpush1.msra.mxu0 0.0
  %806 = vmatprep.subr.mxu0 0.0
  %807 = vmatpush1.msra.mxu0 0.0
  %808 = vmatprep.subr.mxu0 0.0
  %809 = vmatpush1.msra.mxu0 0.0
  %810 = vmatprep.subr.mxu0 0.0
  %811 = vmatpush1.msra.mxu0 0.0
  %812 = vmatprep.subr.mxu0 0.0
  %813 = vmatpush1.msra.mxu0 0.0
  %814 = vmatprep.subr.mxu0 0.0
  %815 = vmatpush1.msra.mxu0 0.0
  %816 = vmatprep.subr.mxu0 0.0
  %817 = vmatpush1.msra.mxu0 0.0
  %818 = vmatprep.subr.mxu0 0.0
  %819 = vmatpush1.msra.mxu0 0.0
  %820 = vmatprep.subr.mxu0 0.0
  %821 = vmatpush1.msra.mxu0 0.0
  %822 = vmatprep.mubr.f32.mxu0 0.0
  %823 = vmatmul.mubr.f32.gmra.mrb[0].mxu0 %v756
  %v824 = vpop.f32.mrb[0].mxu0
  %v825 = vadd.f32 0.0, %v824
  %v826 = vpop.f32.mrb[0].mxu0
  %827 = vdwg.mxu0
  %v828 = vmul.f32 %v825, %v825
  %v830 = vrot.slane %v828, 7
  %v832 = vsub.f32 %v825, %v830
  %v833 = vadd.f32 %v832, 1e-05
  %v834 = vrsqrt.pop %v833
  %v836 = vrot.slane %v722, 7
  %v838 = vmul.f32 %v834, %v836
  %v840 = vrot.slane %v838, 1
  %v842 = vmul.f32 %v825, %v840
  %v843 = vsub.f32 %v723, %v842
  %v845 = vrot.slane %v843, 7
  %v847 = vsel %vm258, %v840, %v845
  %v849 = vsel %vm362, %v847, 0
  %851 = vmatprep.subr.mxu0 0.0
  %852 = vmatpush1.msra.mxu0 %v368
  %853 = vmatprep.subr.mxu0 0.0
  %854 = vmatpush1.msra.mxu0 0.0
  %855 = vmatprep.subr.mxu0 0.0
  %856 = vmatpush1.msra.mxu0 0.0
  %857 = vmatprep.subr.mxu0 0.0
  %858 = vmatpush1.msra.mxu0 0.0
  %859 = vmatprep.subr.mxu0 0.0
  %860 = vmatpush1.msra.mxu0 0.0
  %861 = vmatprep.subr.mxu0 0.0
  %862 = vmatpush1.msra.mxu0 0.0
  %863 = vmatprep.subr.mxu0 0.0
  %864 = vmatpush1.msra.mxu0 0.0
  %865 = vmatprep.subr.mxu0 0.0
  %866 = vmatpush1.msra.mxu0 0.0
  %867 = vmatprep.subr.mxu0 0.0
  %868 = vmatpush1.msra.mxu0 0.0
  %869 = vmatprep.subr.mxu0 0.0
  %870 = vmatpush1.msra.mxu0 0.0
  %871 = vmatprep.subr.mxu0 0.0
  %872 = vmatpush1.msra.mxu0 0.0
  %873 = vmatprep.subr.mxu0 0.0
  %874 = vmatpush1.msra.mxu0 0.0
  %875 = vmatprep.subr.mxu0 0.0
  %876 = vmatpush1.msra.mxu0 0.0
  %877 = vmatprep.subr.mxu0 0.0
  %878 = vmatpush1.msra.mxu0 0.0
  %879 = vmatprep.subr.mxu0 0.0
  %880 = vmatpush1.msra.mxu0 0.0
  %881 = vmatprep.subr.mxu0 0.0
  %882 = vmatpush1.msra.mxu0 0.0
  %883 = vmatprep.subr.mxu0 0.0
  %884 = vmatpush1.msra.mxu0 0.0
  %885 = vmatprep.subr.mxu0 0.0
  %886 = vmatpush1.msra.mxu0 0.0
  %887 = vmatprep.subr.mxu0 0.0
  %888 = vmatpush1.msra.mxu0 0.0
  %889 = vmatprep.subr.mxu0 0.0
  %890 = vmatpush1.msra.mxu0 0.0
  %891 = vmatprep.subr.mxu0 0.0
  %892 = vmatpush1.msra.mxu0 0.0
  %893 = vmatprep.subr.mxu0 0.0
  %894 = vmatpush1.msra.mxu0 0.0
  %895 = vmatprep.subr.mxu0 0.0
  %896 = vmatpush1.msra.mxu0 0.0
  %897 = vmatprep.subr.mxu0 0.0
  %898 = vmatpush1.msra.mxu0 0.0
  %899 = vmatprep.subr.mxu0 0.0
  %900 = vmatpush1.msra.mxu0 0.0
  %901 = vmatprep.subr.mxu0 0.0
  %902 = vmatpush1.msra.mxu0 0.0
  %903 = vmatprep.subr.mxu0 0.0
  %904 = vmatpush1.msra.mxu0 0.0
  %905 = vmatprep.subr.mxu0 0.0
  %906 = vmatpush1.msra.mxu0 0.0
  %907 = vmatprep.subr.mxu0 0.0
  %908 = vmatpush1.msra.mxu0 0.0
  %909 = vmatprep.subr.mxu0 0.0
  %910 = vmatpush1.msra.mxu0 0.0
  %911 = vmatprep.subr.mxu0 0.0
  %912 = vmatpush1.msra.mxu0 0.0
  %913 = vmatprep.subr.mxu0 0.0
  %914 = vmatpush1.msra.mxu0 0.0
  %915 = vmatprep.mubr.f32.mxu0 0.0
  %916 = vmatmul.mubr.f32.gmra.mrb[0].mxu0 %v849
  %v917 = vpop.f32.mrb[0].mxu0
  %v918 = vadd.f32 0.0, %v917
  %v919 = vpop.f32.mrb[0].mxu0
  %920 = vdwg.mxu0
  %v921 = vlaneseq
  %v922 = vshrl.u32 %v921, 7
  %v923 = vsub.s32 0, %v922
  %v924 = vrot.slane %v918, %v923
  %v925 = vmul.f32 %v708, %v924
  %v926 = vmul.f32 %v711, %v924
  %v927 = vmul.f32 %v716, %v924
  %v928 = vmul.f32 %v719, %v924
  %v929 = vlaneseq
  %v930 = vshrl.u32 %v929, 7
  %v931 = vsub.s32 1, %v930
  %v932 = vrot.slane %v918, %v931
  %v933 = vadd.f32 %v925, %v932
  %v934 = vadd.f32 %v926, %v932
  %v935 = vadd.f32 %v927, %v932
  %v936 = vadd.f32 %v928, %v932
  %v937 = vmax.f32 %v933, 0.0
  %v938 = vmax.f32 %v934, 0.0
  %v939 = vmax.f32 %v935, 0.0
  %v940 = vmax.f32 %v936, 0.0
  %v941 = vpack.c.bf16 %v938, %v937
  %v942 = vpack.c.bf16 %v940, %v939
  %v943 = vld [vmem:[%s3] sm:$0xff]
  %v944 = vld [vmem:[%s3 + $0x8] sm:$0xff]
  %v945 = vld [vmem:[%s3 + $0x10] sm:$0xff]
  %v946 = vld [vmem:[%s3 + $0x18] sm:$0xff]
  %v947 = vld [vmem:[%s3 + $0x20] sm:$0xff]
  %v948 = vld [vmem:[%s3 + $0x28] sm:$0xff]
  %v949 = vld [vmem:[%s3 + $0x30] sm:$0xff]
  %v950 = vld [vmem:[%s3 + $0x38] sm:$0xff]
  %v959 = vunpack.c.l.b16 %v943
  %v960 = vunpack.c.h.b16 %v943
  %v961 = vunpack.c.l.b16 %v944
  %v962 = vunpack.c.h.b16 %v944
  %v963 = vunpack.c.l.b16 %v945
  %v964 = vunpack.c.h.b16 %v945
  %v965 = vunpack.c.l.b16 %v946
  %v966 = vunpack.c.h.b16 %v946
  %v967 = vunpack.c.l.b16 %v947
  %v968 = vunpack.c.h.b16 %v947
  %v969 = vunpack.c.l.b16 %v948
  %v970 = vunpack.c.h.b16 %v948
  %v971 = vunpack.c.l.b16 %v949
  %v972 = vunpack.c.h.b16 %v949
  %v973 = vunpack.c.l.b16 %v950
  %v974 = vunpack.c.h.b16 %v950
  %v975 = vpack.c.b16 %v961, %v959
  %v976 = vpack.c.b16 %v962, %v960
  %v977 = vpack.c.b16 %v965, %v963
  %v978 = vpack.c.b16 %v966, %v964
  %v979 = vpack.c.b16 %v969, %v967
  %v980 = vpack.c.b16 %v970, %v968
  %v981 = vpack.c.b16 %v973, %v971
  %v982 = vpack.c.b16 %v974, %v972
  %v992 = vsel %vm227, %v941, 0
  %v995 = vsel %vm227, %v942, 0
  %997 = vmatprep.subr.bf16.mxu0 %v976
  %998 = vmatpush1.bf16.msra.mxu0 %v975
  %999 = vmatprep.subr.bf16.mxu0 %v978
  %1000 = vmatpush1.bf16.msra.mxu0 %v977
  %1001 = vmatprep.subr.bf16.mxu0 %v980
  %1002 = vmatpush1.bf16.msra.mxu0 %v979
  %1003 = vmatprep.subr.bf16.mxu0 %v982
  %1004 = vmatpush1.bf16.msra.mxu0 %v981
  %1005 = vmatprep.subr.bf16.mxu0 0
  %1006 = vmatpush1.bf16.msra.mxu0 0
  %1007 = vmatprep.subr.bf16.mxu0 0
  %1008 = vmatpush1.bf16.msra.mxu0 0
  %1009 = vmatprep.subr.bf16.mxu0 0
  %1010 = vmatpush1.bf16.msra.mxu0 0
  %1011 = vmatprep.subr.bf16.mxu0 0
  %1012 = vmatpush1.bf16.msra.mxu0 0
  %1013 = vmatprep.subr.bf16.mxu0 0
  %1014 = vmatpush1.bf16.msra.mxu0 0
  %1015 = vmatprep.subr.bf16.mxu0 0
  %1016 = vmatpush1.bf16.msra.mxu0 0
  %1017 = vmatprep.subr.bf16.mxu0 0
  %1018 = vmatpush1.bf16.msra.mxu0 0
  %1019 = vmatprep.subr.bf16.mxu0 0
  %1020 = vmatpush1.bf16.msra.mxu0 0
  %1021 = vmatprep.subr.bf16.mxu0 0
  %1022 = vmatpush1.bf16.msra.mxu0 0
  %1023 = vmatprep.subr.bf16.mxu0 0
  %1024 = vmatpush1.bf16.msra.mxu0 0
  %1025 = vmatprep.subr.bf16.mxu0 0
  %1026 = vmatpush1.bf16.msra.mxu0 0
  %1027 = vmatprep.subr.bf16.mxu0 0
  %1028 = vmatpush1.bf16.msra.mxu0 0
  %1029 = vmatprep.mubr.bf16.mxu0 0
  %1030 = vmatmul.mubr.bf16.gmra.mrb[0].mxu0 %v992
  %v1031 = vpop.f32.mrb[0].mxu0
  %v1032 = vadd.f32 0.0, %v1031
  %v1033 = vpop.f32.mrb[0].mxu0
  %v1034 = vadd.f32 0.0, %v1033
  %v1035 = vpop.f32.mrb[0].mxu0
  %v1036 = vadd.f32 0.0, %v1035
  %v1037 = vpop.f32.mrb[0].mxu0
  %v1038 = vadd.f32 0.0, %v1037
  %1039 = vmatprep.mubr.bf16.mxu0 0
  %1040 = vmatmul.mubr.bf16.gmra.mrb[0].mxu0 %v995
  %v1041 = vpop.f32.mrb[0].mxu0
  %v1042 = vadd.f32 0.0, %v1041
  %v1043 = vpop.f32.mrb[0].mxu0
  %v1044 = vadd.f32 0.0, %v1043
  %v1045 = vpop.f32.mrb[0].mxu0
  %v1046 = vadd.f32 0.0, %v1045
  %v1047 = vpop.f32.mrb[0].mxu0
  %v1048 = vadd.f32 0.0, %v1047
  %1049 = vdwg.mxu0
  %v1050 = vld [vmem:[%s9] sm:$0x1]
  %v1051 = vld [vmem:[%s9 + $0x1] sm:$0x1]
  %v1052 = vadd.f32 %v1032, %v1036
  %v1053 = vadd.f32 %v1052, %v1042
  %v1054 = vadd.f32 %v1053, %v1046
  %v1055 = vrot.slane %v1054, 4
  %v1056 = vadd.f32 %v1054, %v1055
  %v1057 = vrot.slane %v1056, 2
  %v1058 = vadd.f32 %v1056, %v1057
  %v1059 = vrot.slane %v1058, 1
  %v1060 = vadd.f32 %v1058, %v1059
  %v1061 = vadd.f32 %v1034, %v1038
  %v1062 = vadd.f32 %v1061, %v1044
  %v1063 = vadd.f32 %v1062, %v1048
  %v1064 = vrot.slane %v1063, 4
  %v1065 = vadd.f32 %v1063, %v1064
  %v1066 = vrot.slane %v1065, 2
  %v1067 = vadd.f32 %v1065, %v1066
  %v1068 = vrot.slane %v1067, 1
  %v1069 = vadd.f32 %v1067, %v1068
  %v1070 = vmul.f32 %v1032, %v1032
  %v1071 = vmul.f32 %v1034, %v1034
  %v1072 = vmul.f32 %v1036, %v1036
  %v1073 = vmul.f32 %v1038, %v1038
  %v1074 = vmul.f32 %v1042, %v1042
  %v1075 = vmul.f32 %v1044, %v1044
  %v1076 = vmul.f32 %v1046, %v1046
  %v1077 = vmul.f32 %v1048, %v1048
  %v1078 = vadd.f32 %v1070, %v1072
  %v1079 = vadd.f32 %v1078, %v1074
  %v1080 = vadd.f32 %v1079, %v1076
  %v1081 = vrot.slane %v1080, 4
  %v1082 = vadd.f32 %v1080, %v1081
  %v1083 = vrot.slane %v1082, 2
  %v1084 = vadd.f32 %v1082, %v1083
  %v1085 = vrot.slane %v1084, 1
  %v1086 = vadd.f32 %v1084, %v1085
  %v1087 = vadd.f32 %v1071, %v1073
  %v1088 = vadd.f32 %v1087, %v1075
  %v1089 = vadd.f32 %v1088, %v1077
  %v1090 = vrot.slane %v1089, 4
  %v1091 = vadd.f32 %v1089, %v1090
  %v1092 = vrot.slane %v1091, 2
  %v1093 = vadd.f32 %v1091, %v1092
  %v1094 = vrot.slane %v1093, 1
  %v1095 = vadd.f32 %v1093, %v1094
  %v1096 = vsel %vm258, %v1060, %v1086
  %v1097 = vsel %vm258, %v1069, %v1095
  %v1098 = vld [vmem:[%s6] sm:$0xff]
  %v1099 = vld [vmem:[%s6 + $0x8] sm:$0xff]
  %v1100 = vld [vmem:[%s6 + $0x10] sm:$0xff]
  %v1101 = vld [vmem:[%s6 + $0x18] sm:$0xff]
  %v1102 = vld [vmem:[%s6 + $0x20] sm:$0xff]
  %v1103 = vld [vmem:[%s6 + $0x28] sm:$0xff]
  %v1104 = vld [vmem:[%s6 + $0x30] sm:$0xff]
  %v1105 = vld [vmem:[%s6 + $0x38] sm:$0xff]
  %v1106 = vld [vmem:[%s6 + $0x40] sm:$0xff]
  %v1107 = vld [vmem:[%s6 + $0x48] sm:$0xff]
  %v1108 = vld [vmem:[%s6 + $0x50] sm:$0xff]
  %v1109 = vld [vmem:[%s6 + $0x58] sm:$0xff]
  %v1110 = vld [vmem:[%s6 + $0x60] sm:$0xff]
  %v1111 = vld [vmem:[%s6 + $0x68] sm:$0xff]
  %v1112 = vld [vmem:[%s6 + $0x70] sm:$0xff]
  %v1113 = vld [vmem:[%s6 + $0x78] sm:$0xff]
  %v1114 = vld [vmem:[%s6 + $0x80] sm:$0xff]
  %v1115 = vld [vmem:[%s6 + $0x88] sm:$0xff]
  %v1116 = vld [vmem:[%s6 + $0x90] sm:$0xff]
  %v1117 = vld [vmem:[%s6 + $0x98] sm:$0xff]
  %v1118 = vld [vmem:[%s6 + $0xa0] sm:$0xff]
  %v1119 = vld [vmem:[%s6 + $0xa8] sm:$0xff]
  %v1120 = vld [vmem:[%s6 + $0xb0] sm:$0xff]
  %v1121 = vld [vmem:[%s6 + $0xb8] sm:$0xff]
  %v1122 = vld [vmem:[%s6 + $0xc0] sm:$0xff]
  %v1123 = vld [vmem:[%s6 + $0xc8] sm:$0xff]
  %v1124 = vld [vmem:[%s6 + $0xd0] sm:$0xff]
  %v1125 = vld [vmem:[%s6 + $0xd8] sm:$0xff]
  %v1126 = vld [vmem:[%s6 + $0xe0] sm:$0xff]
  %v1127 = vld [vmem:[%s6 + $0xe8] sm:$0xff]
  %v1128 = vld [vmem:[%s6 + $0xf0] sm:$0xff]
  %v1129 = vld [vmem:[%s6 + $0xf8] sm:$0xff]
  %1130 = vmatprep.subr.mxu0 0.0
  %1131 = vmatpush1.msra.mxu0 %v1098
  %1132 = vmatprep.subr.mxu0 0.0
  %1133 = vmatpush1.msra.mxu0 %v1099
  %1134 = vmatprep.subr.mxu0 0.0
  %1135 = vmatpush1.msra.mxu0 %v1100
  %1136 = vmatprep.subr.mxu0 0.0
  %1137 = vmatpush1.msra.mxu0 %v1101
  %1138 = vmatprep.subr.mxu0 0.0
  %1139 = vmatpush1.msra.mxu0 %v1102
  %1140 = vmatprep.subr.mxu0 0.0
  %1141 = vmatpush1.msra.mxu0 %v1103
  %1142 = vmatprep.subr.mxu0 0.0
  %1143 = vmatpush1.msra.mxu0 %v1104
  %1144 = vmatprep.subr.mxu0 0.0
  %1145 = vmatpush1.msra.mxu0 %v1105
  %1146 = vmatprep.subr.mxu0 0.0
  %1147 = vmatpush1.msra.mxu0 %v1106
  %1148 = vmatprep.subr.mxu0 0.0
  %1149 = vmatpush1.msra.mxu0 %v1107
  %1150 = vmatprep.subr.mxu0 0.0
  %1151 = vmatpush1.msra.mxu0 %v1108
  %1152 = vmatprep.subr.mxu0 0.0
  %1153 = vmatpush1.msra.mxu0 %v1109
  %1154 = vmatprep.subr.mxu0 0.0
  %1155 = vmatpush1.msra.mxu0 %v1110
  %1156 = vmatprep.subr.mxu0 0.0
  %1157 = vmatpush1.msra.mxu0 %v1111
  %1158 = vmatprep.subr.mxu0 0.0
  %1159 = vmatpush1.msra.mxu0 %v1112
  %1160 = vmatprep.subr.mxu0 0.0
  %1161 = vmatpush1.msra.mxu0 %v1113
  %1162 = vmatprep.subr.mxu0 0.0
  %1163 = vmatpush1.msra.mxu0 %v1114
  %1164 = vmatprep.subr.mxu0 0.0
  %1165 = vmatpush1.msra.mxu0 %v1115
  %1166 = vmatprep.subr.mxu0 0.0
  %1167 = vmatpush1.msra.mxu0 %v1116
  %1168 = vmatprep.subr.mxu0 0.0
  %1169 = vmatpush1.msra.mxu0 %v1117
  %1170 = vmatprep.subr.mxu0 0.0
  %1171 = vmatpush1.msra.mxu0 %v1118
  %1172 = vmatprep.subr.mxu0 0.0
  %1173 = vmatpush1.msra.mxu0 %v1119
  %1174 = vmatprep.subr.mxu0 0.0
  %1175 = vmatpush1.msra.mxu0 %v1120
  %1176 = vmatprep.subr.mxu0 0.0
  %1177 = vmatpush1.msra.mxu0 %v1121
  %1178 = vmatprep.subr.mxu0 0.0
  %1179 = vmatpush1.msra.mxu0 %v1122
  %1180 = vmatprep.subr.mxu0 0.0
  %1181 = vmatpush1.msra.mxu0 %v1123
  %1182 = vmatprep.subr.mxu0 0.0
  %1183 = vmatpush1.msra.mxu0 %v1124
  %1184 = vmatprep.subr.mxu0 0.0
  %1185 = vmatpush1.msra.mxu0 %v1125
  %1186 = vmatprep.subr.mxu0 0.0
  %1187 = vmatpush1.msra.mxu0 %v1126
  %1188 = vmatprep.subr.mxu0 0.0
  %1189 = vmatpush1.msra.mxu0 %v1127
  %1190 = vmatprep.subr.mxu0 0.0
  %1191 = vmatpush1.msra.mxu0 %v1128
  %1192 = vmatprep.subr.mxu0 0.0
  %1193 = vmatpush1.msra.mxu0 %v1129
  %1194 = vmatprep.mubr.f32.mxu0 %v1097
  %1195 = vmatmul.mubr.f32.gmra.mrb[0].mxu0 %v1096
  %v1196 = vpop.f32.mrb[0].mxu0
  %v1197 = vadd.f32 0.0, %v1196
  %v1198 = vpop.f32.mrb[0].mxu0
  %1199 = vdwg.mxu0
  %v1200 = vmul.f32 %v1197, %v1197
  %v1202 = vrot.slane %v1200, 7
  %v1204 = vsub.f32 %v1197, %v1202
  %v1205 = vadd.f32 %v1204, 1e-05
  %v1206 = vrsqrt.pop %v1205
  %v1208 = vrot.slane %v1050, 7
  %v1210 = vmul.f32 %v1206, %v1208
  %v1212 = vrot.slane %v1210, 1
  %v1214 = vmul.f32 %v1197, %v1212
  %v1215 = vsub.f32 %v1051, %v1214
  %v1217 = vrot.slane %v1215, 7
  %v1219 = vsel %vm258, %v1212, %v1217
  %v1220 = vld [vmem:[%s7] sm:$0xff]
  %v1221 = vld [vmem:[%s7 + $0x8] sm:$0xff]
  %v1222 = vld [vmem:[%s7 + $0x10] sm:$0xff]
  %v1223 = vld [vmem:[%s7 + $0x18] sm:$0xff]
  %vm1224 = vcmask 130048
  %v1226 = vsel %vm1224, %v1219, 0
  %1228 = vmatprep.subr.mxu0 %v1221
  %1229 = vmatpush1.msra.mxu0 %v1220
  %1230 = vmatprep.subr.mxu0 %v1223
  %1231 = vmatpush1.msra.mxu0 %v1222
  %1232 = vmatprep.subr.mxu0 0.0
  %1233 = vmatpush1.msra.mxu0 0.0
  %1234 = vmatprep.subr.mxu0 0.0
  %1235 = vmatpush1.msra.mxu0 0.0
  %1236 = vmatprep.subr.mxu0 0.0
  %1237 = vmatpush1.msra.mxu0 0.0
  %1238 = vmatprep.subr.mxu0 0.0
  %1239 = vmatpush1.msra.mxu0 0.0
  %1240 = vmatprep.subr.mxu0 0.0
  %1241 = vmatpush1.msra.mxu0 0.0
  %1242 = vmatprep.subr.mxu0 0.0
  %1243 = vmatpush1.msra.mxu0 0.0
  %1244 = vmatprep.subr.mxu0 0.0
  %1245 = vmatpush1.msra.mxu0 0.0
  %1246 = vmatprep.subr.mxu0 0.0
  %1247 = vmatpush1.msra.mxu0 0.0
  %1248 = vmatprep.subr.mxu0 0.0
  %1249 = vmatpush1.msra.mxu0 0.0
  %1250 = vmatprep.subr.mxu0 0.0
  %1251 = vmatpush1.msra.mxu0 0.0
  %1252 = vmatprep.subr.mxu0 0.0
  %1253 = vmatpush1.msra.mxu0 0.0
  %1254 = vmatprep.subr.mxu0 0.0
  %1255 = vmatpush1.msra.mxu0 0.0
  %1256 = vmatprep.subr.mxu0 0.0
  %1257 = vmatpush1.msra.mxu0 0.0
  %1258 = vmatprep.subr.mxu0 0.0
  %1259 = vmatpush1.msra.mxu0 0.0
  %1260 = vmatprep.subr.mxu0 0.0
  %1261 = vmatpush1.msra.mxu0 0.0
  %1262 = vmatprep.subr.mxu0 0.0
  %1263 = vmatpush1.msra.mxu0 0.0
  %1264 = vmatprep.subr.mxu0 0.0
  %1265 = vmatpush1.msra.mxu0 0.0
  %1266 = vmatprep.subr.mxu0 0.0
  %1267 = vmatpush1.msra.mxu0 0.0
  %1268 = vmatprep.subr.mxu0 0.0
  %1269 = vmatpush1.msra.mxu0 0.0
  %1270 = vmatprep.subr.mxu0 0.0
  %1271 = vmatpush1.msra.mxu0 0.0
  %1272 = vmatprep.subr.mxu0 0.0
  %1273 = vmatpush1.msra.mxu0 0.0
  %1274 = vmatprep.subr.mxu0 0.0
  %1275 = vmatpush1.msra.mxu0 0.0
  %1276 = vmatprep.subr.mxu0 0.0
  %1277 = vmatpush1.msra.mxu0 0.0
  %1278 = vmatprep.subr.mxu0 0.0
  %1279 = vmatpush1.msra.mxu0 0.0
  %1280 = vmatprep.subr.mxu0 0.0
  %1281 = vmatpush1.msra.mxu0 0.0
  %1282 = vmatprep.subr.mxu0 0.0
  %1283 = vmatpush1.msra.mxu0 0.0
  %1284 = vmatprep.subr.mxu0 0.0
  %1285 = vmatpush1.msra.mxu0 0.0
  %1286 = vmatprep.subr.mxu0 0.0
  %1287 = vmatpush1.msra.mxu0 0.0
  %1288 = vmatprep.subr.mxu0 0.0
  %1289 = vmatpush1.msra.mxu0 0.0
  %1290 = vmatprep.subr.mxu0 0.0
  %1291 = vmatpush1.msra.mxu0 0.0
  %1292 = vmatprep.mubr.f32.mxu0 0.0
  %1293 = vmatmul.mubr.f32.gmra.mrb[0].mxu0 %v1226
  %v1294 = vpop.f32.mrb[0].mxu0
  %v1295 = vadd.f32 0.0, %v1294
  %v1296 = vpop.f32.mrb[0].mxu0
  %v1297 = vadd.f32 0.0, %v1296
  %1298 = vdwg.mxu0
  %v1299 = vlaneseq
  %v1300 = vshrl.u32 %v1299, 7
  %v1301 = vsub.s32 0, %v1300
  %v1302 = vrot.slane %v1295, %v1301
  %v1303 = vlaneseq
  %v1304 = vshrl.u32 %v1303, 7
  %v1305 = vsub.s32 0, %v1304
  %v1306 = vrot.slane %v1297, %v1305
  %v1307 = vmul.f32 %v1032, %v1302
  %v1308 = vmul.f32 %v1034, %v1306
  %v1309 = vmul.f32 %v1036, %v1302
  %v1310 = vmul.f32 %v1038, %v1306
  %v1311 = vmul.f32 %v1042, %v1302
  %v1312 = vmul.f32 %v1044, %v1306
  %v1313 = vmul.f32 %v1046, %v1302
  %v1314 = vmul.f32 %v1048, %v1306
  %v1315 = vlaneseq
  %v1316 = vshrl.u32 %v1315, 7
  %v1317 = vsub.s32 1, %v1316
  %v1318 = vrot.slane %v1295, %v1317
  %v1319 = vlaneseq
  %v1320 = vshrl.u32 %v1319, 7
  %v1321 = vsub.s32 1, %v1320
  %v1322 = vrot.slane %v1297, %v1321
  %v1323 = vadd.f32 %v1307, %v1318
  %v1324 = vadd.f32 %v1308, %v1322
  %v1325 = vadd.f32 %v1309, %v1318
  %v1326 = vadd.f32 %v1310, %v1322
  %v1327 = vadd.f32 %v1311, %v1318
  %v1328 = vadd.f32 %v1312, %v1322
  %v1329 = vadd.f32 %v1313, %v1318
  %v1330 = vadd.f32 %v1314, %v1322
  %v1331 = vadd.f32 %v1323, %v36
  %v1332 = vadd.f32 %v1324, %v37
  %v1333 = vadd.f32 %v1325, %v38
  %v1334 = vadd.f32 %v1326, %v39
  %v1335 = vadd.f32 %v1327, %v40
  %v1336 = vadd.f32 %v1328, %v41
  %v1337 = vadd.f32 %v1329, %v42
  %v1338 = vadd.f32 %v1330, %v43
  %v1339 = vmax.f32 %v1331, 0.0
  %v1340 = vmax.f32 %v1332, 0.0
  %v1341 = vmax.f32 %v1333, 0.0
  %v1342 = vmax.f32 %v1334, 0.0
  %v1343 = vmax.f32 %v1335, 0.0
  %v1344 = vmax.f32 %v1336, 0.0
  %v1345 = vmax.f32 %v1337, 0.0
  %v1346 = vmax.f32 %v1338, 0.0
  %1347 = vst [vmem:[%s10] sm:$0xff] %v1339
  %1348 = vst [vmem:[%s10 + $0x8] sm:$0xff] %v1340
  %1349 = vst [vmem:[%s10 + $0x10] sm:$0xff] %v1341
  %1350 = vst [vmem:[%s10 + $0x18] sm:$0xff] %v1342
  %1351 = vst [vmem:[%s10 + $0x20] sm:$0xff] %v1343
  %1352 = vst [vmem:[%s10 + $0x28] sm:$0xff] %v1344
  %1353 = vst [vmem:[%s10 + $0x30] sm:$0xff] %v1345
  %1354 = vst [vmem:[%s10 + $0x38] sm:$0xff] %v1346
  // Predicated region
  $region42: #{run.1} parent=0 // pred_check
    _
  $region43: #{run.1} parent=0 // pred_check_branch
    %1356 = sbr.rel (0) target = $region45
  $region44: #{run.1} parent=0 // pred_region
    _
  $region45: #{run.1} parent=0 // pred_fallthru
    _
  // Predicated region
  $region46: #{run.1} parent=0 // pred_check
    _
  $region47: #{run.1} parent=0 // pred_check_branch
    %1358 = sbr.rel (0) target = $region49
  $region48: #{run.1} parent=0 // pred_region
    _
  $region49: #{run.1} parent=0 // pred_fallthru
    _

</llo_original>
